<compile_context>
chip_gen: v6e
topology: v6e:2x2x1
jax: 0.10.0
libtpu: 0.0.40
codegen_flags: <defaults>
</compile_context>

<pallas_src>
import functools
import math

import jax
import jax.numpy as jnp
from jax.experimental import pallas as pl
from jax.experimental.pallas import tpu as pltpu


# ----------------------------- tiling helper --------------------------------

def _fit_tile(dim, pref, mult):
    """Largest tile <= pref that divides dim and is a multiple of mult.
    Falls back to the full dim (always legal for BlockSpec)."""
    if dim <= pref:
        return dim
    t = (pref // mult) * mult
    while t >= mult:
        if dim % t == 0:
            return t
        t -= mult
    return dim


# ----------------------------- Pallas kernels -------------------------------

def _layernorm_f32(x_ref, g_ref, b_ref, eps):
    x = x_ref[...].astype(jnp.float32)
    mu = jnp.mean(x, axis=-1, keepdims=True)
    var = jnp.mean(jnp.square(x - mu), axis=-1, keepdims=True)
    y = (x - mu) * jax.lax.rsqrt(var + eps)
    return y * g_ref[...] + b_ref[...]


def _gelu(x):
    # Megatron GPT-2 gelu_impl (tanh approximation), f32 epilogue.
    return 0.5 * x * (1.0 + jnp.tanh(
        0.7978845608028654 * x * (1.0 + 0.044715 * x * x)))


def _ln_matmul_kernel(x_ref, g_ref, b_ref, w_ref, bias_ref, o_ref, *,
                      eps, activation):
    # Fused LayerNorm (f32 stats) -> bf16 matmul (f32 acc) -> bias (+ gelu).
    xn = _layernorm_f32(x_ref, g_ref, b_ref, eps).astype(w_ref.dtype)
    acc = jnp.dot(xn, w_ref[...], preferred_element_type=jnp.float32)
    acc = acc + bias_ref[...]
    if activation == "gelu":
        acc = _gelu(acc)
    o_ref[...] = acc.astype(o_ref.dtype)


def _matmul_res_kernel(x_ref, w_ref, bias_ref, res_ref, o_ref, acc_ref):
    # K-tiled matmul with f32 VMEM accumulator; bias + residual fused epilogue.
    @pl.when(pl.program_id(2) == 0)
    def _():
        acc_ref[...] = jnp.zeros_like(acc_ref)

    acc_ref[...] += jnp.dot(x_ref[...], w_ref[...],
                            preferred_element_type=jnp.float32)

    @pl.when(pl.program_id(2) == pl.num_programs(2) - 1)
    def _():
        acc = acc_ref[...] + bias_ref[...] + res_ref[...].astype(jnp.float32)
        o_ref[...] = acc.astype(o_ref.dtype)


def _attention_kernel(qkv_ref, o_ref, *, num_heads, head_dim, hidden, scale,
                      seq_len):
    # One batch per grid step; qkv block is (S, 3*hidden): Q | K | V, heads
    # contiguous inside each third.  Causal mask generated in-kernel (no DMA).
    row = jax.lax.broadcasted_iota(jnp.int32, (seq_len, seq_len), 0)
    col = jax.lax.broadcasted_iota(jnp.int32, (seq_len, seq_len), 1)
    causal = col > row
    # TODO(synk): flash-style KV tiling for very long sequences; 2-head packing
    # when head_dim < 128 (lane under-utilization) is not implemented.
    for h in range(num_heads):
        q = qkv_ref[:, h * head_dim:(h + 1) * head_dim]
        k = qkv_ref[:, hidden + h * head_dim:hidden + (h + 1) * head_dim]
        v = qkv_ref[:, 2 * hidden + h * head_dim:2 * hidden + (h + 1) * head_dim]
        # scores = q @ k^T (bf16 in, f32 acc), then attention_mask_func fill.
        s = jax.lax.dot_general(q, k, (((1,), (1,)), ((), ())),
                                preferred_element_type=jnp.float32) * scale
        s = jnp.where(causal, -10000.0, s)
        s = s - jnp.max(s, axis=-1, keepdims=True)
        p = jnp.exp(s)
        p = p * pl.reciprocal(jnp.sum(p, axis=-1, keepdims=True), approx=True)
        ctx = jnp.dot(p.astype(v.dtype), v, preferred_element_type=jnp.float32)
        o_ref[:, h * head_dim:(h + 1) * head_dim] = ctx.astype(o_ref.dtype)


def _ln_logits_kernel(x_ref, g_ref, b_ref, w_ref, o_ref, *, eps):
    # Fused final LN + logits = LN(x) @ wte.T, transpose-free via dot_general,
    # f32 output (parallel_lm_logits precision).
    xn = _layernorm_f32(x_ref, g_ref, b_ref, eps).astype(w_ref.dtype)
    o_ref[...] = jax.lax.dot_general(
        xn, w_ref[...], (((1,), (1,)), ((), ())),
        preferred_element_type=jnp.float32).astype(o_ref.dtype)


# ------------------------------- wrappers ------------------------------------

def ln_linear(x, gamma, beta, w, b, eps, activation=None, *, tm=256, tn=512):
    m, k = x.shape
    n = w.shape[1]
    tm = _fit_tile(m, tm, 8)
    tn = _fit_tile(n, tn, 128)
    return pl.pallas_call(
        functools.partial(_ln_matmul_kernel, eps=eps, activation=activation),
        out_shape=jax.ShapeDtypeStruct((m, n), x.dtype),
        grid=(m // tm, n // tn),
        in_specs=[pl.BlockSpec((tm, k), lambda i, j: (i, 0)),
                  pl.BlockSpec((1, k), lambda i, j: (0, 0)),
                  pl.BlockSpec((1, k), lambda i, j: (0, 0)),
                  pl.BlockSpec((k, tn), lambda i, j: (0, j)),
                  pl.BlockSpec((1, tn), lambda i, j: (0, j))],
        out_specs=pl.BlockSpec((tm, tn), lambda i, j: (i, j)),
        compiler_params=pltpu.CompilerParams(
            dimension_semantics=("parallel", "parallel")),
    )(x, gamma.reshape(1, k), beta.reshape(1, k), w, b.reshape(1, n))


def linear_residual(x, w, b, residual, *, tm=256, tn=512, tk=512):
    m, k = x.shape
    n = w.shape[1]
    tm = _fit_tile(m, tm, 8)
    tn = _fit_tile(n, tn, 128)
    tk = _fit_tile(k, tk, 128)
    return pl.pallas_call(
        _matmul_res_kernel,
        out_shape=jax.ShapeDtypeStruct((m, n), x.dtype),
        grid=(m // tm, n // tn, k // tk),
        in_specs=[pl.BlockSpec((tm, tk), lambda i, j, kk: (i, kk)),
                  pl.BlockSpec((tk, tn), lambda i, j, kk: (kk, j)),
                  pl.BlockSpec((1, tn), lambda i, j, kk: (0, j)),
                  pl.BlockSpec((tm, tn), lambda i, j, kk: (i, j))],
        out_specs=pl.BlockSpec((tm, tn), lambda i, j, kk: (i, j)),
        scratch_shapes=[pltpu.VMEM((tm, tn), jnp.float32)],
        compiler_params=pltpu.CompilerParams(
            dimension_semantics=("parallel", "parallel", "arbitrary")),
    )(x, w, b.reshape(1, n), residual)


def attention(qkv, *, batch, seq, num_heads, head_dim, hidden, scale):
    m = batch * seq
    return pl.pallas_call(
        functools.partial(_attention_kernel, num_heads=num_heads,
                          head_dim=head_dim, hidden=hidden, scale=scale,
                          seq_len=seq),
        out_shape=jax.ShapeDtypeStruct((m, hidden), qkv.dtype),
        grid=(batch,),
        in_specs=[pl.BlockSpec((seq, 3 * hidden), lambda bi: (bi, 0))],
        out_specs=pl.BlockSpec((seq, hidden), lambda bi: (bi, 0)),
        compiler_params=pltpu.CompilerParams(
            dimension_semantics=("parallel",)),
    )(qkv)


def ln_lm_logits(x, gamma, beta, wte, eps, *, tm=256, tv=512):
    m, h = x.shape
    v = wte.shape[0]
    tm = _fit_tile(m, tm, 8)
    tv = _fit_tile(v, tv, 128)
    return pl.pallas_call(
        functools.partial(_ln_logits_kernel, eps=eps),
        out_shape=jax.ShapeDtypeStruct((m, v), jnp.float32),
        grid=(m // tm, v // tv),
        in_specs=[pl.BlockSpec((tm, h), lambda i, j: (i, 0)),
                  pl.BlockSpec((1, h), lambda i, j: (0, 0)),
                  pl.BlockSpec((1, h), lambda i, j: (0, 0)),
                  pl.BlockSpec((tv, h), lambda i, j: (j, 0))],
        out_specs=pl.BlockSpec((tm, tv), lambda i, j: (i, j)),
        compiler_params=pltpu.CompilerParams(
            dimension_semantics=("parallel", "parallel")),
    )(x, gamma.reshape(1, h), beta.reshape(1, h), wte)


# ------------------------------ model glue -----------------------------------

def init_params(key, *, hidden, vocab, seq_len, num_layers,
                weight_dtype=jnp.bfloat16):
    std = 0.02
    keys = jax.random.split(key, 2 + 4 * num_layers)
    ki = iter(keys)

    def w_init(k, shape):
        return (std * jax.random.normal(k, shape, jnp.float32)).astype(weight_dtype)

    params = {
        "wte": w_init(next(ki), (vocab, hidden)),
        "wpe": w_init(next(ki), (seq_len, hidden)),
        "lnf_g": jnp.ones((hidden,), jnp.float32),
        "lnf_b": jnp.zeros((hidden,), jnp.float32),
        "layers": [],
    }
    for _ in range(num_layers):
        params["layers"].append({
            "ln1_g": jnp.ones((hidden,), jnp.float32),
            "ln1_b": jnp.zeros((hidden,), jnp.float32),
            "qkv_w": w_init(next(ki), (hidden, 3 * hidden)),
            "qkv_b": jnp.zeros((3 * hidden,), jnp.float32),
            "attn_o_w": w_init(next(ki), (hidden, hidden)),
            "attn_o_b": jnp.zeros((hidden,), jnp.float32),
            "ln2_g": jnp.ones((hidden,), jnp.float32),
            "ln2_b": jnp.zeros((hidden,), jnp.float32),
            "fc_w": w_init(next(ki), (hidden, 4 * hidden)),
            "fc_b": jnp.zeros((4 * hidden,), jnp.float32),
            "proj_w": w_init(next(ki), (4 * hidden, hidden)),
            "proj_b": jnp.zeros((hidden,), jnp.float32),
        })
    return params


def gpt2_forward(params, input_ids, position_ids, attention_mask, *,
                 hidden, num_heads, eps):
    # TODO(synk): arbitrary (non-causal) attention_mask is not supported; the
    # attention kernel regenerates the standard causal mask in-VMEM via iota,
    # matching the masked_fill(mask, -10000.0) attention_mask_func semantics.
    del attention_mask
    B, S = input_ids.shape
    dh = hidden // num_heads
    scale = 1.0 / math.sqrt(dh)

    # Embedding gathers stay in plain JAX (glue); hidden_dropout = identity (eval).
    h = jnp.take(params["wte"], input_ids, axis=0) + \
        jnp.take(params["wpe"], position_ids, axis=0)
    x = h.reshape(B * S, hidden)

    for layer in params["layers"]:
        # --- self-attention block (pre-LN fused into the QKV matmul) ---
        qkv = ln_linear(x, layer["ln1_g"], layer["ln1_b"],
                        layer["qkv_w"], layer["qkv_b"], eps)
        ctx = attention(qkv, batch=B, seq=S, num_heads=num_heads,
                        head_dim=dh, hidden=hidden, scale=scale)
        x = linear_residual(ctx, layer["attn_o_w"], layer["attn_o_b"], x)
        # --- MLP block (pre-LN fused into fc, residual fused into proj) ---
        h1 = ln_linear(x, layer["ln2_g"], layer["ln2_b"],
                       layer["fc_w"], layer["fc_b"], eps, activation="gelu")
        x = linear_residual(h1, layer["proj_w"], layer["proj_b"], x)

    # Final LN fused into the logits matmul; logits in f32 (parallel_lm_logits).
    logits = ln_lm_logits(x, params["lnf_g"], params["lnf_b"], params["wte"], eps)
    return logits.reshape(B, S, -1)       # labels=None branch of GPT2.forward


# --------------------------------- main ---------------------------------------

if __name__ == "__main__":
    # Small config consistent with the module's __init__ signature.
    hidden_size = 32
    vocab_size = 64
    sequence_length = 8
    num_layers = 2
    num_attention_heads = 4
    layernorm_epsilon = 1e-5
    batch = 2

    key = jax.random.PRNGKey(0)
    k_param, k_ids = jax.random.split(key)

    params = init_params(k_param, hidden=hidden_size, vocab=vocab_size,
                         seq_len=sequence_length, num_layers=num_layers)

    input_ids = jax.random.randint(k_ids, (batch, sequence_length), 0, vocab_size,
                                   dtype=jnp.int32)
    position_ids = jnp.broadcast_to(
        jnp.arange(sequence_length, dtype=jnp.int32)[None, :],
        (batch, sequence_length))
    # Causal (left-to-right) mask: 1.0 where attention is NOT allowed.
    causal = 1.0 - jnp.tril(jnp.ones((sequence_length, sequence_length), jnp.float32))
    attention_mask = causal[None, None, :, :]   # (1, 1, S, S)

    fwd = jax.jit(functools.partial(
        gpt2_forward, hidden=hidden_size, num_heads=num_attention_heads,
        eps=layernorm_epsilon))
    logits = fwd(params, input_ids, position_ids, attention_mask)
    jax.block_until_ready(logits)

    assert logits.shape == (batch, sequence_length, vocab_size)
    assert logits.dtype == jnp.float32
    assert jnp.all(jnp.isfinite(logits))
    print("KERNEL_OK")
</pallas_src>

<mosaic_0001>
module attributes {stable_mosaic.version = 11 : i64} {
  func.func @_matmul_res_kernel(%arg0: i32, %arg1: i32, %arg2: i32, %arg3: memref<16x32xbf16, #tpu.memory_space<vmem>>, %arg4: memref<32x32xbf16, #tpu.memory_space<vmem>>, %arg5: memref<1x32xf32, #tpu.memory_space<vmem>>, %arg6: memref<16x32xbf16, #tpu.memory_space<vmem>>, %arg7: memref<16x32xbf16, #tpu.memory_space<vmem>>, %arg8: memref<16x32xf32, #tpu.memory_space<vmem>>) attributes {dimension_semantics = [#tpu.dimension_semantics<parallel>, #tpu.dimension_semantics<parallel>, #tpu.dimension_semantics<arbitrary>], iteration_bounds = array<i64: 1, 1, 1>, scalar_prefetch = 0 : i64, scratch_operands = 1 : i64, tpu.core_type = #tpu.core_type<tc>, window_params = [{transform_indices = @transform_0, window_bounds = array<i64: 16, 32>}, {transform_indices = @transform_1, window_bounds = array<i64: 32, 32>}, {transform_indices = @transform_2, window_bounds = array<i64: 1, 32>}, {transform_indices = @transform_3, window_bounds = array<i64: 16, 32>}, {transform_indices = @transform_4, window_bounds = array<i64: 16, 32>}]} {
    %c0_i32 = arith.constant 0 : i32
    %0 = arith.cmpi eq, %arg2, %c0_i32 : i32
    %1 = arith.extui %0 : i1 to i32
    %c0_i32_0 = arith.constant 0 : i32
    %2 = arith.cmpi ne, %1, %c0_i32_0 : i32
    scf.if %2 {
      %cst_10 = arith.constant 0.000000e+00 : f32
      %12 = vector.broadcast %cst_10 : f32 to vector<16x32xf32>
      %c0_11 = arith.constant 0 : index
      %c0_12 = arith.constant 0 : index
      %13 = vector.load %arg8[%c0_11, %c0_12] : memref<16x32xf32, #tpu.memory_space<vmem>>, vector<16x32xf32>
      tpu.vector_store %arg8[%c0_11, %c0_12], %12 {strides = array<i32>} : memref<16x32xf32, #tpu.memory_space<vmem>>, vector<16x32xf32>,
    } else {
    }
    %c0 = arith.constant 0 : index
    %c0_1 = arith.constant 0 : index
    %3 = vector.load %arg8[%c0, %c0_1] : memref<16x32xf32, #tpu.memory_space<vmem>>, vector<16x32xf32>
    %c0_2 = arith.constant 0 : index
    %c0_3 = arith.constant 0 : index
    %4 = vector.load %arg3[%c0_2, %c0_3] : memref<16x32xbf16, #tpu.memory_space<vmem>>, vector<16x32xbf16>
    %c0_4 = arith.constant 0 : index
    %c0_5 = arith.constant 0 : index
    %5 = vector.load %arg4[%c0_4, %c0_5] : memref<32x32xbf16, #tpu.memory_space<vmem>>, vector<32x32xbf16>
    %cst = arith.constant dense<0.000000e+00> : vector<16x32xf32>
    %6 = tpu.matmul %4, %5, %cst {dimension_numbers = #tpu.dot_dimension_numbers<[1], [0], [0], [1], [0, 0, 1, 1], [], []>} : vector<16x32xbf16>, vector<32x32xbf16>, vector<16x32xf32> -> vector<16x32xf32>
    %7 = arith.addf %3, %6 : vector<16x32xf32>
    %c0_6 = arith.constant 0 : index
    %c0_7 = arith.constant 0 : index
    %8 = vector.load %arg8[%c0_6, %c0_7] : memref<16x32xf32, #tpu.memory_space<vmem>>, vector<16x32xf32>
    tpu.vector_store %arg8[%c0_6, %c0_7], %7 {strides = array<i32>} : memref<16x32xf32, #tpu.memory_space<vmem>>, vector<16x32xf32>,
    %c0_i32_8 = arith.constant 0 : i32
    %9 = arith.cmpi eq, %arg2, %c0_i32_8 : i32
    %10 = arith.extui %9 : i1 to i32
    %c0_i32_9 = arith.constant 0 : i32
    %11 = arith.cmpi ne, %10, %c0_i32_9 : i32
    scf.if %11 {
      %c0_10 = arith.constant 0 : index
      %c0_11 = arith.constant 0 : index
      %12 = vector.load %arg8[%c0_10, %c0_11] : memref<16x32xf32, #tpu.memory_space<vmem>>, vector<16x32xf32>
      %c0_12 = arith.constant 0 : index
      %c0_13 = arith.constant 0 : index
      %13 = vector.load %arg5[%c0_12, %c0_13] : memref<1x32xf32, #tpu.memory_space<vmem>>, vector<1x32xf32>
      %14 = vector.broadcast %13 : vector<1x32xf32> to vector<16x32xf32>
      %15 = arith.addf %12, %14 : vector<16x32xf32>
      %c0_14 = arith.constant 0 : index
      %c0_15 = arith.constant 0 : index
      %16 = vector.load %arg6[%c0_14, %c0_15] : memref<16x32xbf16, #tpu.memory_space<vmem>>, vector<16x32xbf16>
      %17 = arith.extf %16 : vector<16x32xbf16> to vector<16x32xf32>
      %18 = arith.addf %15, %17 : vector<16x32xf32>
      %19 = arith.truncf %18 : vector<16x32xf32> to vector<16x32xbf16>
      %c0_16 = arith.constant 0 : index
      %c0_17 = arith.constant 0 : index
      %20 = vector.load %arg7[%c0_16, %c0_17] : memref<16x32xbf16, #tpu.memory_space<vmem>>, vector<16x32xbf16>
      tpu.vector_store %arg7[%c0_16, %c0_17], %19 {strides = array<i32>} : memref<16x32xbf16, #tpu.memory_space<vmem>>, vector<16x32xbf16>,
    } else {
    }
    return
  }
  func.func @transform_0(%arg0: i32, %arg1: i32, %arg2: i32) -> (i32, i32) {
    %c0_i32 = arith.constant 0 : i32
    return %arg0, %arg2 : i32, i32
  }
  func.func @transform_1(%arg0: i32, %arg1: i32, %arg2: i32) -> (i32, i32) {
    %c0_i32 = arith.constant 0 : i32
    return %arg2, %arg1 : i32, i32
  }
  func.func @transform_2(%arg0: i32, %arg1: i32, %arg2: i32) -> (i32, i32) {
    %c0_i32 = arith.constant 0 : i32
    %c0_i32_0 = arith.constant 0 : i32
    return %c0_i32, %arg1 : i32, i32
  }
  func.func @transform_3(%arg0: i32, %arg1: i32, %arg2: i32) -> (i32, i32) {
    %c0_i32 = arith.constant 0 : i32
    return %arg0, %arg1 : i32, i32
  }
  func.func @transform_4(%arg0: i32, %arg1: i32, %arg2: i32) -> (i32, i32) {
    %c0_i32 = arith.constant 0 : i32
    return %arg0, %arg1 : i32, i32
  }
}

module attributes {stable_mosaic.version = 11 : i64} {
  func.func @_ln_matmul_kernel(%arg0: i32, %arg1: i32, %arg2: memref<16x32xbf16, #tpu.memory_space<vmem>>, %arg3: memref<1x32xf32, #tpu.memory_space<vmem>>, %arg4: memref<1x32xf32, #tpu.memory_space<vmem>>, %arg5: memref<32x96xbf16, #tpu.memory_space<vmem>>, %arg6: memref<1x96xf32, #tpu.memory_space<vmem>>, %arg7: memref<16x96xbf16, #tpu.memory_space<vmem>>) attributes {dimension_semantics = [#tpu.dimension_semantics<parallel>, #tpu.dimension_semantics<parallel>], iteration_bounds = array<i64: 1, 1>, scalar_prefetch = 0 : i64, scratch_operands = 0 : i64, tpu.core_type = #tpu.core_type<tc>, window_params = [{transform_indices = @transform_0, window_bounds = array<i64: 16, 32>}, {pipeline_mode = #tpu.pipeline_mode<synchronous>, transform_indices = @transform_1, window_bounds = array<i64: 1, 32>}, {pipeline_mode = #tpu.pipeline_mode<synchronous>, transform_indices = @transform_2, window_bounds = array<i64: 1, 32>}, {transform_indices = @transform_3, window_bounds = array<i64: 32, 96>}, {transform_indices = @transform_4, window_bounds = array<i64: 1, 96>}, {transform_indices = @transform_5, window_bounds = array<i64: 16, 96>}]} {
    %c0 = arith.constant 0 : index
    %c0_0 = arith.constant 0 : index
    %0 = vector.load %arg2[%c0, %c0_0] : memref<16x32xbf16, #tpu.memory_space<vmem>>, vector<16x32xbf16>
    %1 = arith.extf %0 : vector<16x32xbf16> to vector<16x32xf32>
    %cst = arith.constant dense<0.000000e+00> : vector<16xf32>
    %2 = vector.multi_reduction <add>, %1, %cst [1] : vector<16x32xf32> to vector<16xf32>
    %3 = vector.shape_cast %2 : vector<16xf32> to vector<16x1xf32>
    %cst_1 = arith.constant 3.200000e+01 : f32
    %4 = vector.broadcast %cst_1 : f32 to vector<16x1xf32>
    %5 = arith.divf %3, %4 : vector<16x1xf32>
    %6 = vector.broadcast %5 : vector<16x1xf32> to vector<16x32xf32>
    %7 = arith.subf %1, %6 : vector<16x32xf32>
    %8 = arith.mulf %7, %7 : vector<16x32xf32>
    %cst_2 = arith.constant dense<0.000000e+00> : vector<16xf32>
    %9 = vector.multi_reduction <add>, %8, %cst_2 [1] : vector<16x32xf32> to vector<16xf32>
    %10 = vector.shape_cast %9 : vector<16xf32> to vector<16x1xf32>
    %cst_3 = arith.constant 3.200000e+01 : f32
    %11 = vector.broadcast %cst_3 : f32 to vector<16x1xf32>
    %12 = arith.divf %10, %11 : vector<16x1xf32>
    %13 = vector.broadcast %5 : vector<16x1xf32> to vector<16x32xf32>
    %14 = arith.subf %1, %13 : vector<16x32xf32>
    %cst_4 = arith.constant 9.99999974E-6 : f32
    %15 = vector.broadcast %cst_4 : f32 to vector<16x1xf32>
    %16 = arith.addf %12, %15 : vector<16x1xf32>
    %17 = math.rsqrt %16 : vector<16x1xf32>
    %18 = vector.broadcast %17 : vector<16x1xf32> to vector<16x32xf32>
    %19 = arith.mulf %14, %18 : vector<16x32xf32>
    %c0_5 = arith.constant 0 : index
    %c0_6 = arith.constant 0 : index
    %20 = vector.load %arg3[%c0_5, %c0_6] : memref<1x32xf32, #tpu.memory_space<vmem>>, vector<1x32xf32>
    %21 = vector.broadcast %20 : vector<1x32xf32> to vector<16x32xf32>
    %22 = arith.mulf %19, %21 : vector<16x32xf32>
    %c0_7 = arith.constant 0 : index
    %c0_8 = arith.constant 0 : index
    %23 = vector.load %arg4[%c0_7, %c0_8] : memref<1x32xf32, #tpu.memory_space<vmem>>, vector<1x32xf32>
    %24 = vector.broadcast %23 : vector<1x32xf32> to vector<16x32xf32>
    %25 = arith.addf %22, %24 : vector<16x32xf32>
    %26 = arith.truncf %25 : vector<16x32xf32> to vector<16x32xbf16>
    %c0_9 = arith.constant 0 : index
    %c0_10 = arith.constant 0 : index
    %27 = vector.load %arg5[%c0_9, %c0_10] : memref<32x96xbf16, #tpu.memory_space<vmem>>, vector<32x96xbf16>
    %cst_11 = arith.constant dense<0.000000e+00> : vector<16x96xf32>
    %28 = tpu.matmul %26, %27, %cst_11 {dimension_numbers = #tpu.dot_dimension_numbers<[1], [0], [0], [1], [0, 0, 1, 1], [], []>} : vector<16x32xbf16>, vector<32x96xbf16>, vector<16x96xf32> -> vector<16x96xf32>
    %c0_12 = arith.constant 0 : index
    %c0_13 = arith.constant 0 : index
    %29 = vector.load %arg6[%c0_12, %c0_13] : memref<1x96xf32, #tpu.memory_space<vmem>>, vector<1x96xf32>
    %30 = vector.broadcast %29 : vector<1x96xf32> to vector<16x96xf32>
    %31 = arith.addf %28, %30 : vector<16x96xf32>
    %32 = arith.truncf %31 : vector<16x96xf32> to vector<16x96xbf16>
    %c0_14 = arith.constant 0 : index
    %c0_15 = arith.constant 0 : index
    %33 = vector.load %arg7[%c0_14, %c0_15] : memref<16x96xbf16, #tpu.memory_space<vmem>>, vector<16x96xbf16>
    tpu.vector_store %arg7[%c0_14, %c0_15], %32 {strides = array<i32>} : memref<16x96xbf16, #tpu.memory_space<vmem>>, vector<16x96xbf16>,
    return
  }
  func.func @transform_0(%arg0: i32, %arg1: i32) -> (i32, i32) {
    %c0_i32 = arith.constant 0 : i32
    %c0_i32_0 = arith.constant 0 : i32
    return %arg0, %c0_i32 : i32, i32
  }
  func.func @transform_1(%arg0: i32, %arg1: i32) -> (i32, i32) {
    %c0_i32 = arith.constant 0 : i32
    %c0_i32_0 = arith.constant 0 : i32
    %c0_i32_1 = arith.constant 0 : i32
    return %c0_i32, %c0_i32_0 : i32, i32
  }
  func.func @transform_2(%arg0: i32, %arg1: i32) -> (i32, i32) {
    %c0_i32 = arith.constant 0 : i32
    %c0_i32_0 = arith.constant 0 : i32
    %c0_i32_1 = arith.constant 0 : i32
    return %c0_i32, %c0_i32_0 : i32, i32
  }
  func.func @transform_3(%arg0: i32, %arg1: i32) -> (i32, i32) {
    %c0_i32 = arith.constant 0 : i32
    %c0_i32_0 = arith.constant 0 : i32
    return %c0_i32, %arg1 : i32, i32
  }
  func.func @transform_4(%arg0: i32, %arg1: i32) -> (i32, i32) {
    %c0_i32 = arith.constant 0 : i32
    %c0_i32_0 = arith.constant 0 : i32
    return %c0_i32, %arg1 : i32, i32
  }
  func.func @transform_5(%arg0: i32, %arg1: i32) -> (i32, i32) {
    %c0_i32 = arith.constant 0 : i32
    return %arg0, %arg1 : i32, i32
  }
}

module attributes {stable_mosaic.version = 11 : i64} {
  func.func @_attention_kernel(%arg0: i32, %arg1: memref<8x96xbf16, #tpu.memory_space<vmem>>, %arg2: memref<8x32xbf16, #tpu.memory_space<vmem>>) attributes {dimension_semantics = [#tpu.dimension_semantics<parallel>], iteration_bounds = array<i64: 2>, scalar_prefetch = 0 : i64, scratch_operands = 0 : i64, tpu.core_type = #tpu.core_type<tc>, window_params = [{transform_indices = @transform_0, window_bounds = array<i64: 8, 96>}, {transform_indices = @transform_1, window_bounds = array<i64: 8, 32>}]} {
    %0 = tpu.iota {dimensions = array<i32: 0>} : vector<8x8xi32>
    %1 = tpu.iota {dimensions = array<i32: 1>} : vector<8x8xi32>
    %2 = arith.cmpi sgt, %1, %0 : vector<8x8xi32>
    %c0 = arith.constant 0 : index
    %c0_0 = arith.constant 0 : index
    %3 = vector.load %arg1[%c0, %c0_0] : memref<8x96xbf16, #tpu.memory_space<vmem>>, vector<8x8xbf16>
    %c0_1 = arith.constant 0 : index
    %c32 = arith.constant 32 : index
    %4 = vector.load %arg1[%c0_1, %c32] : memref<8x96xbf16, #tpu.memory_space<vmem>>, vector<8x8xbf16>
    %c0_2 = arith.constant 0 : index
    %c64 = arith.constant 64 : index
    %5 = vector.load %arg1[%c0_2, %c64] : memref<8x96xbf16, #tpu.memory_space<vmem>>, vector<8x8xbf16>
    %cst = arith.constant dense<0.000000e+00> : vector<8x8xf32>
    %6 = tpu.matmul %3, %4, %cst {dimension_numbers = #tpu.dot_dimension_numbers<[1], [1], [0], [0], [0, 0, 1, 0], [], []>} : vector<8x8xbf16>, vector<8x8xbf16>, vector<8x8xf32> -> vector<8x8xf32>
    %cst_3 = arith.constant 0.353553385 : f32
    %7 = vector.broadcast %cst_3 : f32 to vector<8x8xf32>
    %8 = arith.mulf %6, %7 : vector<8x8xf32>
    %cst_4 = arith.constant -1.000000e+04 : f32
    %9 = vector.broadcast %cst_4 : f32 to vector<8x8xf32>
    %10 = arith.select %2, %9, %8 : vector<8x8xi1>, vector<8x8xf32>
    %cst_5 = arith.constant dense<0xFF800000> : vector<8xf32>
    %11 = vector.multi_reduction <maximumf>, %10, %cst_5 [1] : vector<8x8xf32> to vector<8xf32>
    %12 = vector.shape_cast %11 : vector<8xf32> to vector<8x1xf32>
    %13 = vector.broadcast %12 : vector<8x1xf32> to vector<8x8xf32>
    %14 = arith.subf %10, %13 : vector<8x8xf32>
    %15 = math.exp %14 : vector<8x8xf32>
    %cst_6 = arith.constant dense<0.000000e+00> : vector<8xf32>
    %16 = vector.multi_reduction <add>, %15, %cst_6 [1] : vector<8x8xf32> to vector<8xf32>
    %17 = vector.shape_cast %16 : vector<8xf32> to vector<8x1xf32>
    %18 = tpu.reciprocal %17 {approx = true} : vector<8x1xf32> -> vector<8x1xf32>
    %19 = vector.broadcast %18 : vector<8x1xf32> to vector<8x8xf32>
    %20 = arith.mulf %15, %19 : vector<8x8xf32>
    %21 = arith.truncf %20 : vector<8x8xf32> to vector<8x8xbf16>
    %cst_7 = arith.constant dense<0.000000e+00> : vector<8x8xf32>
    %22 = tpu.matmul %21, %5, %cst_7 {dimension_numbers = #tpu.dot_dimension_numbers<[1], [0], [0], [1], [0, 0, 1, 1], [], []>} : vector<8x8xbf16>, vector<8x8xbf16>, vector<8x8xf32> -> vector<8x8xf32>
    %23 = arith.truncf %22 : vector<8x8xf32> to vector<8x8xbf16>
    %c0_8 = arith.constant 0 : index
    %c0_9 = arith.constant 0 : index
    %24 = vector.load %arg2[%c0_8, %c0_9] : memref<8x32xbf16, #tpu.memory_space<vmem>>, vector<8x8xbf16>
    tpu.vector_store %arg2[%c0_8, %c0_9], %23 {strides = array<i32>} : memref<8x32xbf16, #tpu.memory_space<vmem>>, vector<8x8xbf16>,
    %c0_10 = arith.constant 0 : index
    %c8 = arith.constant 8 : index
    %25 = vector.load %arg1[%c0_10, %c8] : memref<8x96xbf16, #tpu.memory_space<vmem>>, vector<8x8xbf16>
    %c0_11 = arith.constant 0 : index
    %c40 = arith.constant 40 : index
    %26 = vector.load %arg1[%c0_11, %c40] : memref<8x96xbf16, #tpu.memory_space<vmem>>, vector<8x8xbf16>
    %c0_12 = arith.constant 0 : index
    %c72 = arith.constant 72 : index
    %27 = vector.load %arg1[%c0_12, %c72] : memref<8x96xbf16, #tpu.memory_space<vmem>>, vector<8x8xbf16>
    %cst_13 = arith.constant dense<0.000000e+00> : vector<8x8xf32>
    %28 = tpu.matmul %25, %26, %cst_13 {dimension_numbers = #tpu.dot_dimension_numbers<[1], [1], [0], [0], [0, 0, 1, 0], [], []>} : vector<8x8xbf16>, vector<8x8xbf16>, vector<8x8xf32> -> vector<8x8xf32>
    %cst_14 = arith.constant 0.353553385 : f32
    %29 = vector.broadcast %cst_14 : f32 to vector<8x8xf32>
    %30 = arith.mulf %28, %29 : vector<8x8xf32>
    %cst_15 = arith.constant -1.000000e+04 : f32
    %31 = vector.broadcast %cst_15 : f32 to vector<8x8xf32>
    %32 = arith.select %2, %31, %30 : vector<8x8xi1>, vector<8x8xf32>
    %cst_16 = arith.constant dense<0xFF800000> : vector<8xf32>
    %33 = vector.multi_reduction <maximumf>, %32, %cst_16 [1] : vector<8x8xf32> to vector<8xf32>
    %34 = vector.shape_cast %33 : vector<8xf32> to vector<8x1xf32>
    %35 = vector.broadcast %34 : vector<8x1xf32> to vector<8x8xf32>
    %36 = arith.subf %32, %35 : vector<8x8xf32>
    %37 = math.exp %36 : vector<8x8xf32>
    %cst_17 = arith.constant dense<0.000000e+00> : vector<8xf32>
    %38 = vector.multi_reduction <add>, %37, %cst_17 [1] : vector<8x8xf32> to vector<8xf32>
    %39 = vector.shape_cast %38 : vector<8xf32> to vector<8x1xf32>
    %40 = tpu.reciprocal %39 {approx = true} : vector<8x1xf32> -> vector<8x1xf32>
    %41 = vector.broadcast %40 : vector<8x1xf32> to vector<8x8xf32>
    %42 = arith.mulf %37, %41 : vector<8x8xf32>
    %43 = arith.truncf %42 : vector<8x8xf32> to vector<8x8xbf16>
    %cst_18 = arith.constant dense<0.000000e+00> : vector<8x8xf32>
    %44 = tpu.matmul %43, %27, %cst_18 {dimension_numbers = #tpu.dot_dimension_numbers<[1], [0], [0], [1], [0, 0, 1, 1], [], []>} : vector<8x8xbf16>, vector<8x8xbf16>, vector<8x8xf32> -> vector<8x8xf32>
    %45 = arith.truncf %44 : vector<8x8xf32> to vector<8x8xbf16>
    %c0_19 = arith.constant 0 : index
    %c8_20 = arith.constant 8 : index
    %46 = vector.load %arg2[%c0_19, %c8_20] : memref<8x32xbf16, #tpu.memory_space<vmem>>, vector<8x8xbf16>
    tpu.vector_store %arg2[%c0_19, %c8_20], %45 {strides = array<i32>} : memref<8x32xbf16, #tpu.memory_space<vmem>>, vector<8x8xbf16>,
    %c0_21 = arith.constant 0 : index
    %c16 = arith.constant 16 : index
    %47 = vector.load %arg1[%c0_21, %c16] : memref<8x96xbf16, #tpu.memory_space<vmem>>, vector<8x8xbf16>
    %c0_22 = arith.constant 0 : index
    %c48 = arith.constant 48 : index
    %48 = vector.load %arg1[%c0_22, %c48] : memref<8x96xbf16, #tpu.memory_space<vmem>>, vector<8x8xbf16>
    %c0_23 = arith.constant 0 : index
    %c80 = arith.constant 80 : index
    %49 = vector.load %arg1[%c0_23, %c80] : memref<8x96xbf16, #tpu.memory_space<vmem>>, vector<8x8xbf16>
    %cst_24 = arith.constant dense<0.000000e+00> : vector<8x8xf32>
    %50 = tpu.matmul %47, %48, %cst_24 {dimension_numbers = #tpu.dot_dimension_numbers<[1], [1], [0], [0], [0, 0, 1, 0], [], []>} : vector<8x8xbf16>, vector<8x8xbf16>, vector<8x8xf32> -> vector<8x8xf32>
    %cst_25 = arith.constant 0.353553385 : f32
    %51 = vector.broadcast %cst_25 : f32 to vector<8x8xf32>
    %52 = arith.mulf %50, %51 : vector<8x8xf32>
    %cst_26 = arith.constant -1.000000e+04 : f32
    %53 = vector.broadcast %cst_26 : f32 to vector<8x8xf32>
    %54 = arith.select %2, %53, %52 : vector<8x8xi1>, vector<8x8xf32>
    %cst_27 = arith.constant dense<0xFF800000> : vector<8xf32>
    %55 = vector.multi_reduction <maximumf>, %54, %cst_27 [1] : vector<8x8xf32> to vector<8xf32>
    %56 = vector.shape_cast %55 : vector<8xf32> to vector<8x1xf32>
    %57 = vector.broadcast %56 : vector<8x1xf32> to vector<8x8xf32>
    %58 = arith.subf %54, %57 : vector<8x8xf32>
    %59 = math.exp %58 : vector<8x8xf32>
    %cst_28 = arith.constant dense<0.000000e+00> : vector<8xf32>
    %60 = vector.multi_reduction <add>, %59, %cst_28 [1] : vector<8x8xf32> to vector<8xf32>
    %61 = vector.shape_cast %60 : vector<8xf32> to vector<8x1xf32>
    %62 = tpu.reciprocal %61 {approx = true} : vector<8x1xf32> -> vector<8x1xf32>
    %63 = vector.broadcast %62 : vector<8x1xf32> to vector<8x8xf32>
    %64 = arith.mulf %59, %63 : vector<8x8xf32>
    %65 = arith.truncf %64 : vector<8x8xf32> to vector<8x8xbf16>
    %cst_29 = arith.constant dense<0.000000e+00> : vector<8x8xf32>
    %66 = tpu.matmul %65, %49, %cst_29 {dimension_numbers = #tpu.dot_dimension_numbers<[1], [0], [0], [1], [0, 0, 1, 1], [], []>} : vector<8x8xbf16>, vector<8x8xbf16>, vector<8x8xf32> -> vector<8x8xf32>
    %67 = arith.truncf %66 : vector<8x8xf32> to vector<8x8xbf16>
    %c0_30 = arith.constant 0 : index
    %c16_31 = arith.constant 16 : index
    %68 = vector.load %arg2[%c0_30, %c16_31] : memref<8x32xbf16, #tpu.memory_space<vmem>>, vector<8x8xbf16>
    tpu.vector_store %arg2[%c0_30, %c16_31], %67 {strides = array<i32>} : memref<8x32xbf16, #tpu.memory_space<vmem>>, vector<8x8xbf16>,
    %c0_32 = arith.constant 0 : index
    %c24 = arith.constant 24 : index
    %69 = vector.load %arg1[%c0_32, %c24] : memref<8x96xbf16, #tpu.memory_space<vmem>>, vector<8x8xbf16>
    %c0_33 = arith.constant 0 : index
    %c56 = arith.constant 56 : index
    %70 = vector.load %arg1[%c0_33, %c56] : memref<8x96xbf16, #tpu.memory_space<vmem>>, vector<8x8xbf16>
    %c0_34 = arith.constant 0 : index
    %c88 = arith.constant 88 : index
    %71 = vector.load %arg1[%c0_34, %c88] : memref<8x96xbf16, #tpu.memory_space<vmem>>, vector<8x8xbf16>
    %cst_35 = arith.constant dense<0.000000e+00> : vector<8x8xf32>
    %72 = tpu.matmul %69, %70, %cst_35 {dimension_numbers = #tpu.dot_dimension_numbers<[1], [1], [0], [0], [0, 0, 1, 0], [], []>} : vector<8x8xbf16>, vector<8x8xbf16>, vector<8x8xf32> -> vector<8x8xf32>
    %cst_36 = arith.constant 0.353553385 : f32
    %73 = vector.broadcast %cst_36 : f32 to vector<8x8xf32>
    %74 = arith.mulf %72, %73 : vector<8x8xf32>
    %cst_37 = arith.constant -1.000000e+04 : f32
    %75 = vector.broadcast %cst_37 : f32 to vector<8x8xf32>
    %76 = arith.select %2, %75, %74 : vector<8x8xi1>, vector<8x8xf32>
    %cst_38 = arith.constant dense<0xFF800000> : vector<8xf32>
    %77 = vector.multi_reduction <maximumf>, %76, %cst_38 [1] : vector<8x8xf32> to vector<8xf32>
    %78 = vector.shape_cast %77 : vector<8xf32> to vector<8x1xf32>
    %79 = vector.broadcast %78 : vector<8x1xf32> to vector<8x8xf32>
    %80 = arith.subf %76, %79 : vector<8x8xf32>
    %81 = math.exp %80 : vector<8x8xf32>
    %cst_39 = arith.constant dense<0.000000e+00> : vector<8xf32>
    %82 = vector.multi_reduction <add>, %81, %cst_39 [1] : vector<8x8xf32> to vector<8xf32>
    %83 = vector.shape_cast %82 : vector<8xf32> to vector<8x1xf32>
    %84 = tpu.reciprocal %83 {approx = true} : vector<8x1xf32> -> vector<8x1xf32>
    %85 = vector.broadcast %84 : vector<8x1xf32> to vector<8x8xf32>
    %86 = arith.mulf %81, %85 : vector<8x8xf32>
    %87 = arith.truncf %86 : vector<8x8xf32> to vector<8x8xbf16>
    %cst_40 = arith.constant dense<0.000000e+00> : vector<8x8xf32>
    %88 = tpu.matmul %87, %71, %cst_40 {dimension_numbers = #tpu.dot_dimension_numbers<[1], [0], [0], [1], [0, 0, 1, 1], [], []>} : vector<8x8xbf16>, vector<8x8xbf16>, vector<8x8xf32> -> vector<8x8xf32>
    %89 = arith.truncf %88 : vector<8x8xf32> to vector<8x8xbf16>
    %c0_41 = arith.constant 0 : index
    %c24_42 = arith.constant 24 : index
    %90 = vector.load %arg2[%c0_41, %c24_42] : memref<8x32xbf16, #tpu.memory_space<vmem>>, vector<8x8xbf16>
    tpu.vector_store %arg2[%c0_41, %c24_42], %89 {strides = array<i32>} : memref<8x32xbf16, #tpu.memory_space<vmem>>, vector<8x8xbf16>,
    return
  }
  func.func @transform_0(%arg0: i32) -> (i32, i32) {
    %c0_i32 = arith.constant 0 : i32
    %c0_i32_0 = arith.constant 0 : i32
    return %arg0, %c0_i32 : i32, i32
  }
  func.func @transform_1(%arg0: i32) -> (i32, i32) {
    %c0_i32 = arith.constant 0 : i32
    %c0_i32_0 = arith.constant 0 : i32
    return %arg0, %c0_i32 : i32, i32
  }
}

module attributes {stable_mosaic.version = 11 : i64} {
  func.func @_ln_matmul_kernel(%arg0: i32, %arg1: i32, %arg2: memref<16x32xbf16, #tpu.memory_space<vmem>>, %arg3: memref<1x32xf32, #tpu.memory_space<vmem>>, %arg4: memref<1x32xf32, #tpu.memory_space<vmem>>, %arg5: memref<32x128xbf16, #tpu.memory_space<vmem>>, %arg6: memref<1x128xf32, #tpu.memory_space<vmem>>, %arg7: memref<16x128xbf16, #tpu.memory_space<vmem>>) attributes {dimension_semantics = [#tpu.dimension_semantics<parallel>, #tpu.dimension_semantics<parallel>], iteration_bounds = array<i64: 1, 1>, scalar_prefetch = 0 : i64, scratch_operands = 0 : i64, tpu.core_type = #tpu.core_type<tc>, window_params = [{transform_indices = @transform_0, window_bounds = array<i64: 16, 32>}, {pipeline_mode = #tpu.pipeline_mode<synchronous>, transform_indices = @transform_1, window_bounds = array<i64: 1, 32>}, {pipeline_mode = #tpu.pipeline_mode<synchronous>, transform_indices = @transform_2, window_bounds = array<i64: 1, 32>}, {transform_indices = @transform_3, window_bounds = array<i64: 32, 128>}, {transform_indices = @transform_4, window_bounds = array<i64: 1, 128>}, {transform_indices = @transform_5, window_bounds = array<i64: 16, 128>}]} {
    %c0 = arith.constant 0 : index
    %c0_0 = arith.constant 0 : index
    %0 = vector.load %arg2[%c0, %c0_0] : memref<16x32xbf16, #tpu.memory_space<vmem>>, vector<16x32xbf16>
    %1 = arith.extf %0 : vector<16x32xbf16> to vector<16x32xf32>
    %cst = arith.constant dense<0.000000e+00> : vector<16xf32>
    %2 = vector.multi_reduction <add>, %1, %cst [1] : vector<16x32xf32> to vector<16xf32>
    %3 = vector.shape_cast %2 : vector<16xf32> to vector<16x1xf32>
    %cst_1 = arith.constant 3.200000e+01 : f32
    %4 = vector.broadcast %cst_1 : f32 to vector<16x1xf32>
    %5 = arith.divf %3, %4 : vector<16x1xf32>
    %6 = vector.broadcast %5 : vector<16x1xf32> to vector<16x32xf32>
    %7 = arith.subf %1, %6 : vector<16x32xf32>
    %8 = arith.mulf %7, %7 : vector<16x32xf32>
    %cst_2 = arith.constant dense<0.000000e+00> : vector<16xf32>
    %9 = vector.multi_reduction <add>, %8, %cst_2 [1] : vector<16x32xf32> to vector<16xf32>
    %10 = vector.shape_cast %9 : vector<16xf32> to vector<16x1xf32>
    %cst_3 = arith.constant 3.200000e+01 : f32
    %11 = vector.broadcast %cst_3 : f32 to vector<16x1xf32>
    %12 = arith.divf %10, %11 : vector<16x1xf32>
    %13 = vector.broadcast %5 : vector<16x1xf32> to vector<16x32xf32>
    %14 = arith.subf %1, %13 : vector<16x32xf32>
    %cst_4 = arith.constant 9.99999974E-6 : f32
    %15 = vector.broadcast %cst_4 : f32 to vector<16x1xf32>
    %16 = arith.addf %12, %15 : vector<16x1xf32>
    %17 = math.rsqrt %16 : vector<16x1xf32>
    %18 = vector.broadcast %17 : vector<16x1xf32> to vector<16x32xf32>
    %19 = arith.mulf %14, %18 : vector<16x32xf32>
    %c0_5 = arith.constant 0 : index
    %c0_6 = arith.constant 0 : index
    %20 = vector.load %arg3[%c0_5, %c0_6] : memref<1x32xf32, #tpu.memory_space<vmem>>, vector<1x32xf32>
    %21 = vector.broadcast %20 : vector<1x32xf32> to vector<16x32xf32>
    %22 = arith.mulf %19, %21 : vector<16x32xf32>
    %c0_7 = arith.constant 0 : index
    %c0_8 = arith.constant 0 : index
    %23 = vector.load %arg4[%c0_7, %c0_8] : memref<1x32xf32, #tpu.memory_space<vmem>>, vector<1x32xf32>
    %24 = vector.broadcast %23 : vector<1x32xf32> to vector<16x32xf32>
    %25 = arith.addf %22, %24 : vector<16x32xf32>
    %26 = arith.truncf %25 : vector<16x32xf32> to vector<16x32xbf16>
    %c0_9 = arith.constant 0 : index
    %c0_10 = arith.constant 0 : index
    %27 = vector.load %arg5[%c0_9, %c0_10] : memref<32x128xbf16, #tpu.memory_space<vmem>>, vector<32x128xbf16>
    %cst_11 = arith.constant dense<0.000000e+00> : vector<16x128xf32>
    %28 = tpu.matmul %26, %27, %cst_11 {dimension_numbers = #tpu.dot_dimension_numbers<[1], [0], [0], [1], [0, 0, 1, 1], [], []>} : vector<16x32xbf16>, vector<32x128xbf16>, vector<16x128xf32> -> vector<16x128xf32>
    %c0_12 = arith.constant 0 : index
    %c0_13 = arith.constant 0 : index
    %29 = vector.load %arg6[%c0_12, %c0_13] : memref<1x128xf32, #tpu.memory_space<vmem>>, vector<1x128xf32>
    %30 = vector.broadcast %29 : vector<1x128xf32> to vector<16x128xf32>
    %31 = arith.addf %28, %30 : vector<16x128xf32>
    %cst_14 = arith.constant 5.000000e-01 : f32
    %32 = vector.broadcast %cst_14 : f32 to vector<16x128xf32>
    %33 = arith.mulf %32, %31 : vector<16x128xf32>
    %cst_15 = arith.constant 0.797884583 : f32
    %34 = vector.broadcast %cst_15 : f32 to vector<16x128xf32>
    %35 = arith.mulf %34, %31 : vector<16x128xf32>
    %cst_16 = arith.constant 4.471500e-02 : f32
    %36 = vector.broadcast %cst_16 : f32 to vector<16x128xf32>
    %37 = arith.mulf %36, %31 : vector<16x128xf32>
    %38 = arith.mulf %37, %31 : vector<16x128xf32>
    %cst_17 = arith.constant 1.000000e+00 : f32
    %39 = vector.broadcast %cst_17 : f32 to vector<16x128xf32>
    %40 = arith.addf %39, %38 : vector<16x128xf32>
    %41 = arith.mulf %35, %40 : vector<16x128xf32>
    %42 = math.tanh %41 : vector<16x128xf32>
    %cst_18 = arith.constant 1.000000e+00 : f32
    %43 = vector.broadcast %cst_18 : f32 to vector<16x128xf32>
    %44 = arith.addf %43, %42 : vector<16x128xf32>
    %45 = arith.mulf %33, %44 : vector<16x128xf32>
    %46 = arith.truncf %45 : vector<16x128xf32> to vector<16x128xbf16>
    %c0_19 = arith.constant 0 : index
    %c0_20 = arith.constant 0 : index
    %47 = vector.load %arg7[%c0_19, %c0_20] : memref<16x128xbf16, #tpu.memory_space<vmem>>, vector<16x128xbf16>
    tpu.vector_store %arg7[%c0_19, %c0_20], %46 {strides = array<i32>} : memref<16x128xbf16, #tpu.memory_space<vmem>>, vector<16x128xbf16>,
    return
  }
  func.func @transform_0(%arg0: i32, %arg1: i32) -> (i32, i32) {
    %c0_i32 = arith.constant 0 : i32
    %c0_i32_0 = arith.constant 0 : i32
    return %arg0, %c0_i32 : i32, i32
  }
  func.func @transform_1(%arg0: i32, %arg1: i32) -> (i32, i32) {
    %c0_i32 = arith.constant 0 : i32
    %c0_i32_0 = arith.constant 0 : i32
    %c0_i32_1 = arith.constant 0 : i32
    return %c0_i32, %c0_i32_0 : i32, i32
  }
  func.func @transform_2(%arg0: i32, %arg1: i32) -> (i32, i32) {
    %c0_i32 = arith.constant 0 : i32
    %c0_i32_0 = arith.constant 0 : i32
    %c0_i32_1 = arith.constant 0 : i32
    return %c0_i32, %c0_i32_0 : i32, i32
  }
  func.func @transform_3(%arg0: i32, %arg1: i32) -> (i32, i32) {
    %c0_i32 = arith.constant 0 : i32
    %c0_i32_0 = arith.constant 0 : i32
    return %c0_i32, %arg1 : i32, i32
  }
  func.func @transform_4(%arg0: i32, %arg1: i32) -> (i32, i32) {
    %c0_i32 = arith.constant 0 : i32
    %c0_i32_0 = arith.constant 0 : i32
    return %c0_i32, %arg1 : i32, i32
  }
  func.func @transform_5(%arg0: i32, %arg1: i32) -> (i32, i32) {
    %c0_i32 = arith.constant 0 : i32
    return %arg0, %arg1 : i32, i32
  }
}

module attributes {stable_mosaic.version = 11 : i64} {
  func.func @_matmul_res_kernel(%arg0: i32, %arg1: i32, %arg2: i32, %arg3: memref<16x128xbf16, #tpu.memory_space<vmem>>, %arg4: memref<128x32xbf16, #tpu.memory_space<vmem>>, %arg5: memref<1x32xf32, #tpu.memory_space<vmem>>, %arg6: memref<16x32xbf16, #tpu.memory_space<vmem>>, %arg7: memref<16x32xbf16, #tpu.memory_space<vmem>>, %arg8: memref<16x32xf32, #tpu.memory_space<vmem>>) attributes {dimension_semantics = [#tpu.dimension_semantics<parallel>, #tpu.dimension_semantics<parallel>, #tpu.dimension_semantics<arbitrary>], iteration_bounds = array<i64: 1, 1, 1>, scalar_prefetch = 0 : i64, scratch_operands = 1 : i64, tpu.core_type = #tpu.core_type<tc>, window_params = [{transform_indices = @transform_0, window_bounds = array<i64: 16, 128>}, {transform_indices = @transform_1, window_bounds = array<i64: 128, 32>}, {transform_indices = @transform_2, window_bounds = array<i64: 1, 32>}, {transform_indices = @transform_3, window_bounds = array<i64: 16, 32>}, {transform_indices = @transform_4, window_bounds = array<i64: 16, 32>}]} {
    %c0_i32 = arith.constant 0 : i32
    %0 = arith.cmpi eq, %arg2, %c0_i32 : i32
    %1 = arith.extui %0 : i1 to i32
    %c0_i32_0 = arith.constant 0 : i32
    %2 = arith.cmpi ne, %1, %c0_i32_0 : i32
    scf.if %2 {
      %cst_10 = arith.constant 0.000000e+00 : f32
      %12 = vector.broadcast %cst_10 : f32 to vector<16x32xf32>
      %c0_11 = arith.constant 0 : index
      %c0_12 = arith.constant 0 : index
      %13 = vector.load %arg8[%c0_11, %c0_12] : memref<16x32xf32, #tpu.memory_space<vmem>>, vector<16x32xf32>
      tpu.vector_store %arg8[%c0_11, %c0_12], %12 {strides = array<i32>} : memref<16x32xf32, #tpu.memory_space<vmem>>, vector<16x32xf32>,
    } else {
    }
    %c0 = arith.constant 0 : index
    %c0_1 = arith.constant 0 : index
    %3 = vector.load %arg8[%c0, %c0_1] : memref<16x32xf32, #tpu.memory_space<vmem>>, vector<16x32xf32>
    %c0_2 = arith.constant 0 : index
    %c0_3 = arith.constant 0 : index
    %4 = vector.load %arg3[%c0_2, %c0_3] : memref<16x128xbf16, #tpu.memory_space<vmem>>, vector<16x128xbf16>
    %c0_4 = arith.constant 0 : index
    %c0_5 = arith.constant 0 : index
    %5 = vector.load %arg4[%c0_4, %c0_5] : memref<128x32xbf16, #tpu.memory_space<vmem>>, vector<128x32xbf16>
    %cst = arith.constant dense<0.000000e+00> : vector<16x32xf32>
    %6 = tpu.matmul %4, %5, %cst {dimension_numbers = #tpu.dot_dimension_numbers<[1], [0], [0], [1], [0, 0, 1, 1], [], []>} : vector<16x128xbf16>, vector<128x32xbf16>, vector<16x32xf32> -> vector<16x32xf32>
    %7 = arith.addf %3, %6 : vector<16x32xf32>
    %c0_6 = arith.constant 0 : index
    %c0_7 = arith.constant 0 : index
    %8 = vector.load %arg8[%c0_6, %c0_7] : memref<16x32xf32, #tpu.memory_space<vmem>>, vector<16x32xf32>
    tpu.vector_store %arg8[%c0_6, %c0_7], %7 {strides = array<i32>} : memref<16x32xf32, #tpu.memory_space<vmem>>, vector<16x32xf32>,
    %c0_i32_8 = arith.constant 0 : i32
    %9 = arith.cmpi eq, %arg2, %c0_i32_8 : i32
    %10 = arith.extui %9 : i1 to i32
    %c0_i32_9 = arith.constant 0 : i32
    %11 = arith.cmpi ne, %10, %c0_i32_9 : i32
    scf.if %11 {
      %c0_10 = arith.constant 0 : index
      %c0_11 = arith.constant 0 : index
      %12 = vector.load %arg8[%c0_10, %c0_11] : memref<16x32xf32, #tpu.memory_space<vmem>>, vector<16x32xf32>
      %c0_12 = arith.constant 0 : index
      %c0_13 = arith.constant 0 : index
      %13 = vector.load %arg5[%c0_12, %c0_13] : memref<1x32xf32, #tpu.memory_space<vmem>>, vector<1x32xf32>
      %14 = vector.broadcast %13 : vector<1x32xf32> to vector<16x32xf32>
      %15 = arith.addf %12, %14 : vector<16x32xf32>
      %c0_14 = arith.constant 0 : index
      %c0_15 = arith.constant 0 : index
      %16 = vector.load %arg6[%c0_14, %c0_15] : memref<16x32xbf16, #tpu.memory_space<vmem>>, vector<16x32xbf16>
      %17 = arith.extf %16 : vector<16x32xbf16> to vector<16x32xf32>
      %18 = arith.addf %15, %17 : vector<16x32xf32>
      %19 = arith.truncf %18 : vector<16x32xf32> to vector<16x32xbf16>
      %c0_16 = arith.constant 0 : index
      %c0_17 = arith.constant 0 : index
      %20 = vector.load %arg7[%c0_16, %c0_17] : memref<16x32xbf16, #tpu.memory_space<vmem>>, vector<16x32xbf16>
      tpu.vector_store %arg7[%c0_16, %c0_17], %19 {strides = array<i32>} : memref<16x32xbf16, #tpu.memory_space<vmem>>, vector<16x32xbf16>,
    } else {
    }
    return
  }
  func.func @transform_0(%arg0: i32, %arg1: i32, %arg2: i32) -> (i32, i32) {
    %c0_i32 = arith.constant 0 : i32
    return %arg0, %arg2 : i32, i32
  }
  func.func @transform_1(%arg0: i32, %arg1: i32, %arg2: i32) -> (i32, i32) {
    %c0_i32 = arith.constant 0 : i32
    return %arg2, %arg1 : i32, i32
  }
  func.func @transform_2(%arg0: i32, %arg1: i32, %arg2: i32) -> (i32, i32) {
    %c0_i32 = arith.constant 0 : i32
    %c0_i32_0 = arith.constant 0 : i32
    return %c0_i32, %arg1 : i32, i32
  }
  func.func @transform_3(%arg0: i32, %arg1: i32, %arg2: i32) -> (i32, i32) {
    %c0_i32 = arith.constant 0 : i32
    return %arg0, %arg1 : i32, i32
  }
  func.func @transform_4(%arg0: i32, %arg1: i32, %arg2: i32) -> (i32, i32) {
    %c0_i32 = arith.constant 0 : i32
    return %arg0, %arg1 : i32, i32
  }
}

module attributes {stable_mosaic.version = 11 : i64} {
  func.func @_ln_logits_kernel(%arg0: i32, %arg1: i32, %arg2: memref<16x32xbf16, #tpu.memory_space<vmem>>, %arg3: memref<1x32xf32, #tpu.memory_space<vmem>>, %arg4: memref<1x32xf32, #tpu.memory_space<vmem>>, %arg5: memref<64x32xbf16, #tpu.memory_space<vmem>>, %arg6: memref<16x64xf32, #tpu.memory_space<vmem>>) attributes {dimension_semantics = [#tpu.dimension_semantics<parallel>, #tpu.dimension_semantics<parallel>], iteration_bounds = array<i64: 1, 1>, scalar_prefetch = 0 : i64, scratch_operands = 0 : i64, tpu.core_type = #tpu.core_type<tc>, window_params = [{transform_indices = @transform_0, window_bounds = array<i64: 16, 32>}, {pipeline_mode = #tpu.pipeline_mode<synchronous>, transform_indices = @transform_1, window_bounds = array<i64: 1, 32>}, {pipeline_mode = #tpu.pipeline_mode<synchronous>, transform_indices = @transform_2, window_bounds = array<i64: 1, 32>}, {transform_indices = @transform_3, window_bounds = array<i64: 64, 32>}, {transform_indices = @transform_4, window_bounds = array<i64: 16, 64>}]} {
    %c0 = arith.constant 0 : index
    %c0_0 = arith.constant 0 : index
    %0 = vector.load %arg2[%c0, %c0_0] : memref<16x32xbf16, #tpu.memory_space<vmem>>, vector<16x32xbf16>
    %1 = arith.extf %0 : vector<16x32xbf16> to vector<16x32xf32>
    %cst = arith.constant dense<0.000000e+00> : vector<16xf32>
    %2 = vector.multi_reduction <add>, %1, %cst [1] : vector<16x32xf32> to vector<16xf32>
    %3 = vector.shape_cast %2 : vector<16xf32> to vector<16x1xf32>
    %cst_1 = arith.constant 3.200000e+01 : f32
    %4 = vector.broadcast %cst_1 : f32 to vector<16x1xf32>
    %5 = arith.divf %3, %4 : vector<16x1xf32>
    %6 = vector.broadcast %5 : vector<16x1xf32> to vector<16x32xf32>
    %7 = arith.subf %1, %6 : vector<16x32xf32>
    %8 = arith.mulf %7, %7 : vector<16x32xf32>
    %cst_2 = arith.constant dense<0.000000e+00> : vector<16xf32>
    %9 = vector.multi_reduction <add>, %8, %cst_2 [1] : vector<16x32xf32> to vector<16xf32>
    %10 = vector.shape_cast %9 : vector<16xf32> to vector<16x1xf32>
    %cst_3 = arith.constant 3.200000e+01 : f32
    %11 = vector.broadcast %cst_3 : f32 to vector<16x1xf32>
    %12 = arith.divf %10, %11 : vector<16x1xf32>
    %13 = vector.broadcast %5 : vector<16x1xf32> to vector<16x32xf32>
    %14 = arith.subf %1, %13 : vector<16x32xf32>
    %cst_4 = arith.constant 9.99999974E-6 : f32
    %15 = vector.broadcast %cst_4 : f32 to vector<16x1xf32>
    %16 = arith.addf %12, %15 : vector<16x1xf32>
    %17 = math.rsqrt %16 : vector<16x1xf32>
    %18 = vector.broadcast %17 : vector<16x1xf32> to vector<16x32xf32>
    %19 = arith.mulf %14, %18 : vector<16x32xf32>
    %c0_5 = arith.constant 0 : index
    %c0_6 = arith.constant 0 : index
    %20 = vector.load %arg3[%c0_5, %c0_6] : memref<1x32xf32, #tpu.memory_space<vmem>>, vector<1x32xf32>
    %21 = vector.broadcast %20 : vector<1x32xf32> to vector<16x32xf32>
    %22 = arith.mulf %19, %21 : vector<16x32xf32>
    %c0_7 = arith.constant 0 : index
    %c0_8 = arith.constant 0 : index
    %23 = vector.load %arg4[%c0_7, %c0_8] : memref<1x32xf32, #tpu.memory_space<vmem>>, vector<1x32xf32>
    %24 = vector.broadcast %23 : vector<1x32xf32> to vector<16x32xf32>
    %25 = arith.addf %22, %24 : vector<16x32xf32>
    %26 = arith.truncf %25 : vector<16x32xf32> to vector<16x32xbf16>
    %c0_9 = arith.constant 0 : index
    %c0_10 = arith.constant 0 : index
    %27 = vector.load %arg5[%c0_9, %c0_10] : memref<64x32xbf16, #tpu.memory_space<vmem>>, vector<64x32xbf16>
    %cst_11 = arith.constant dense<0.000000e+00> : vector<16x64xf32>
    %28 = tpu.matmul %26, %27, %cst_11 {dimension_numbers = #tpu.dot_dimension_numbers<[1], [1], [0], [0], [0, 0, 1, 0], [], []>} : vector<16x32xbf16>, vector<64x32xbf16>, vector<16x64xf32> -> vector<16x64xf32>
    %c0_12 = arith.constant 0 : index
    %c0_13 = arith.constant 0 : index
    %29 = vector.load %arg6[%c0_12, %c0_13] : memref<16x64xf32, #tpu.memory_space<vmem>>, vector<16x64xf32>
    tpu.vector_store %arg6[%c0_12, %c0_13], %28 {strides = array<i32>} : memref<16x64xf32, #tpu.memory_space<vmem>>, vector<16x64xf32>,
    return
  }
  func.func @transform_0(%arg0: i32, %arg1: i32) -> (i32, i32) {
    %c0_i32 = arith.constant 0 : i32
    %c0_i32_0 = arith.constant 0 : i32
    return %arg0, %c0_i32 : i32, i32
  }
  func.func @transform_1(%arg0: i32, %arg1: i32) -> (i32, i32) {
    %c0_i32 = arith.constant 0 : i32
    %c0_i32_0 = arith.constant 0 : i32
    %c0_i32_1 = arith.constant 0 : i32
    return %c0_i32, %c0_i32_0 : i32, i32
  }
  func.func @transform_2(%arg0: i32, %arg1: i32) -> (i32, i32) {
    %c0_i32 = arith.constant 0 : i32
    %c0_i32_0 = arith.constant 0 : i32
    %c0_i32_1 = arith.constant 0 : i32
    return %c0_i32, %c0_i32_0 : i32, i32
  }
  func.func @transform_3(%arg0: i32, %arg1: i32) -> (i32, i32) {
    %c0_i32 = arith.constant 0 : i32
    %c0_i32_0 = arith.constant 0 : i32
    return %arg1, %c0_i32 : i32, i32
  }
  func.func @transform_4(%arg0: i32, %arg1: i32) -> (i32, i32) {
    %c0_i32 = arith.constant 0 : i32
    return %arg0, %arg1 : i32, i32
  }
}

</mosaic_0001>

<llo_original>
// kernel: gpt2_forward.13
$region0: #{gpt2_forward.13}
  #allocation0 [shape = 'u32[]', space=smem, size = 0x4, offset = 0x4, fixed_abs, tag = 'smem constant byte address 0x4 - core index']
  #allocation1 [shape = 'u32[144,128]{1,0:T(1,128)}', space=vmem, size = 0x12000, scoped, tag = 'internal scratch']
  #allocation2 [shape = 'f32[16,32]{1,0:T(8,128)}', space=vmem, size = 0x2000, scoped, tag = 'scratch operand']
  %s0 = inlined_call_operand.vmem [shape: bf16[16,32], index: 0, kind: input, shape index: {}]
  %s1 = inlined_call_operand.vmem [shape: bf16[32,32], index: 1, kind: input, shape index: {}]
  %s2 = inlined_call_operand.vmem [shape: f32[1,32], index: 2, kind: input, shape index: {}]
  %s3 = inlined_call_operand.vmem [shape: bf16[16,32], index: 3, kind: input, shape index: {}]
  %s4 = inlined_call_operand.vmem [shape: bf16[16,32], index: 4, kind: output, shape index: {}]
  %s5 = sld [smem:[#allocation0]]
  $region34: #{gpt2_forward.13} parent=0
    _
  %s7 = ssub.s32 1, %s5
  %s8 = scalar_select 0, %s7, %s5
  // Predicated region
  $region2: #{gpt2_forward.13} parent=0 // pred_check
    _
  $region3: #{gpt2_forward.13} parent=0 // pred_check_branch
    %10 = sbr.rel (0) target = $region5
  $region4: #{gpt2_forward.13} parent=0 // pred_region
    _
  $region5: #{gpt2_forward.13} parent=0 // pred_fallthru
    _
  // Predicated region
  $region6: #{gpt2_forward.13} parent=0 // pred_check
    _
  $region7: #{gpt2_forward.13} parent=0 // pred_check_branch
    %12 = sbr.rel (0) target = $region9
  $region8: #{gpt2_forward.13} parent=0 // pred_region
    _
  $region9: #{gpt2_forward.13} parent=0 // pred_fallthru
    _
  // Predicated region
  $region10: #{gpt2_forward.13} parent=0 // pred_check
    _
  $region11: #{gpt2_forward.13} parent=0 // pred_check_branch
    %14 = sbr.rel (0) target = $region13
  $region12: #{gpt2_forward.13} parent=0 // pred_region
    _
  $region13: #{gpt2_forward.13} parent=0 // pred_fallthru
    _
  // Predicated region
  $region14: #{gpt2_forward.13} parent=0 // pred_check
    _
  $region15: #{gpt2_forward.13} parent=0 // pred_check_branch
    %16 = sbr.rel (0) target = $region17
  $region16: #{gpt2_forward.13} parent=0 // pred_region
    _
  $region17: #{gpt2_forward.13} parent=0 // pred_fallthru
    _
  %p18 = scmp.eq.s32.totalorder 0, 0
  // Predicated region
  $region18: #{gpt2_forward.13} parent=0 // pred_check
    %p19 = pneg %p18
  $region19: #{gpt2_forward.13} parent=0 // pred_check_branch
    %21 = sbr.rel (%p19) target = $region21
  $region20: #{gpt2_forward.13} parent=0 // pred_region
    %vm22 = vcmask 261120
    %23 = vst.msk [vmem:[#allocation2] sm:$0xff] %vm22, 0.0
    %24 = vst.msk [vmem:[#allocation2 + $0x8] sm:$0xff] %vm22, 0.0
  $region21: #{gpt2_forward.13} parent=0 // pred_fallthru
    _
  %v25 = vld [vmem:[#allocation2] sm:$0xff]
  %v26 = vld [vmem:[#allocation2 + $0x8] sm:$0xff]
  %v27 = vld [vmem:[%s0] sm:$0xf]
  %v28 = vld [vmem:[%s0 + $0x4] sm:$0xf]
  %v29 = vld [vmem:[%s1] sm:$0xf]
  %v30 = vld [vmem:[%s1 + $0x4] sm:$0xf]
  %v31 = vld [vmem:[%s1 + $0x8] sm:$0xf]
  %v32 = vld [vmem:[%s1 + $0xc] sm:$0xf]
  %v35 = vunpack.c.l.b16 %v27
  %v36 = vunpack.c.l.b16 %v28
  %v37 = vpack.c.b16 %v36, %v35
  %v42 = vunpack.c.l.b16 %v29
  %v43 = vunpack.c.l.b16 %v30
  %v44 = vunpack.c.l.b16 %v31
  %v45 = vunpack.c.l.b16 %v32
  %v46 = vpack.c.b16 %v43, %v42
  %v47 = vpack.c.b16 %v45, %v44
  %vm50 = vcmask 261120
  %v52 = vsel %vm50, %v37, 0
  %54 = vmatprep.subr.bf16.mxu0 0
  %55 = vmatpush1.bf16.msra.mxu0 0
  %56 = vmatprep.subr.bf16.mxu0 0
  %57 = vmatpush1.bf16.msra.mxu0 0
  %58 = vmatprep.subr.bf16.mxu0 0
  %59 = vmatpush1.bf16.msra.mxu0 0
  %60 = vmatprep.subr.bf16.mxu0 0
  %61 = vmatpush1.bf16.msra.mxu0 0
  %62 = vmatprep.subr.bf16.mxu0 0
  %63 = vmatpush1.bf16.msra.mxu0 0
  %64 = vmatprep.subr.bf16.mxu0 0
  %65 = vmatpush1.bf16.msra.mxu0 0
  %66 = vmatprep.subr.bf16.mxu0 0
  %67 = vmatpush1.bf16.msra.mxu0 %v47
  %68 = vmatprep.subr.bf16.mxu0 0
  %69 = vmatpush1.bf16.msra.mxu0 %v46
  %70 = vmatprep.subr.bf16.mxu0 0
  %71 = vmatpush2.bf16.msra.mxu0 0
  %72 = vmatprep.subr.bf16.mxu0 0
  %73 = vmatpush2.bf16.msra.mxu0 0
  %74 = vmatprep.subr.bf16.mxu0 0
  %75 = vmatpush2.bf16.msra.mxu0 0
  %76 = vmatprep.subr.bf16.mxu0 0
  %77 = vmatpush2.bf16.msra.mxu0 0
  %78 = vmatprep.subr.bf16.mxu0 0
  %79 = vmatpush2.bf16.msra.mxu0 0
  %80 = vmatprep.subr.bf16.mxu0 0
  %81 = vmatpush2.bf16.msra.mxu0 0
  %82 = vmatprep.subr.bf16.mxu0 0
  %83 = vmatpush2.bf16.msra.mxu0 0
  %84 = vmatprep.subr.bf16.mxu0 0
  %85 = vmatpush2.bf16.msra.mxu0 0
  %86 = vmatprep.mubr.bf16.mxu0 0
  %87 = vmatmul.mubr.bf16.gmra.mxu0 %v52
  %v88 = vpop.f32.mrf.mxu0
  %v89 = vadd.f32 0.0, %v88
  %v90 = vpop.f32.mrf.mxu0
  %v91 = vpop.f32.mrf.mxu0
  %v92 = vadd.f32 0.0, %v91
  %v93 = vpop.f32.mrf.mxu0
  %94 = vdwg.mxu0
  %v95 = vadd.f32 %v25, %v89
  %v96 = vadd.f32 %v26, %v92
  %97 = vst.msk [vmem:[#allocation2] sm:$0xff] %vm50, %v95
  %98 = vst.msk [vmem:[#allocation2 + $0x8] sm:$0xff] %vm50, %v96
  // Predicated region
  $region22: #{gpt2_forward.13} parent=0 // pred_check
    %p99 = pneg %p18
  $region23: #{gpt2_forward.13} parent=0 // pred_check_branch
    %101 = sbr.rel (%p99) target = $region25
  $region24: #{gpt2_forward.13} parent=0 // pred_region
    %v102 = vld [vmem:[#allocation2] sm:$0xff]
    %v103 = vld [vmem:[#allocation2 + $0x8] sm:$0xff]
    %v104 = vld [vmem:[%s2] sm:$0x1]
    %v106 = vlaneseq
    %v107 = vshrl.u32 %v106, 7
    %v108 = vsub.s32 0, %v107
    %v109 = vrot.slane %v104, %v108
    %v111 = vadd.f32 %v102, %v109
    %v112 = vadd.f32 %v103, %v109
    %v113 = vld [vmem:[%s3] sm:$0xf]
    %v114 = vld [vmem:[%s3 + $0x4] sm:$0xf]
    %v115 = vunpack.c.l.bf16 %v113
    %v116 = vunpack.c.l.bf16 %v114
    %v117 = vadd.f32 %v111, %v115
    %v118 = vadd.f32 %v112, %v116
    %v119 = vpack.c.bf16 %v118, %v117
    %v121 = vunpack.c.l.b16 %v119
    %v122 = vunpack.c.h.b16 %v119
    %v123 = vpack.c.b16 %v121, %v121
    %v124 = vpack.c.b16 %v122, %v122
    %vm127 = vcmask 257024
    %128 = vst.msk [vmem:[%s4] sm:$0xf] %vm127, %v123
    %129 = vst.msk [vmem:[%s4 + $0x4] sm:$0xf] %vm127, %v124
  $region25: #{gpt2_forward.13} parent=0 // pred_fallthru
    _
  // Predicated region
  $region26: #{gpt2_forward.13} parent=0 // pred_check
    _
  $region27: #{gpt2_forward.13} parent=0 // pred_check_branch
    %131 = sbr.rel (0) target = $region29
  $region28: #{gpt2_forward.13} parent=0 // pred_region
    _
  $region29: #{gpt2_forward.13} parent=0 // pred_fallthru
    _
  // Predicated region
  $region30: #{gpt2_forward.13} parent=0 // pred_check
    _
  $region31: #{gpt2_forward.13} parent=0 // pred_check_branch
    %133 = sbr.rel (0) target = $region33
  $region32: #{gpt2_forward.13} parent=0 // pred_region
    _
  $region33: #{gpt2_forward.13} parent=0 // pred_fallthru
    _

// kernel: gpt2_forward.11
$region0: #{gpt2_forward.11}
  #allocation0 [shape = 'u32[]', space=smem, size = 0x4, offset = 0x4, fixed_abs, tag = 'smem constant byte address 0x4 - core index']
  #allocation1 [shape = 'u32[144,128]{1,0:T(1,128)}', space=vmem, size = 0x12000, scoped, tag = 'internal scratch']
  %s0 = inlined_call_operand.vmem [shape: bf16[16,32], index: 0, kind: input, shape index: {}]
  %s1 = inlined_call_operand.vmem [shape: f32[1,32], index: 1, kind: input, shape index: {}]
  %s2 = inlined_call_operand.vmem [shape: f32[1,32], index: 2, kind: input, shape index: {}]
  %s3 = inlined_call_operand.vmem [shape: bf16[32,96], index: 3, kind: input, shape index: {}]
  %s4 = inlined_call_operand.vmem [shape: f32[1,96], index: 4, kind: input, shape index: {}]
  %s5 = inlined_call_operand.vmem [shape: bf16[16,96], index: 5, kind: output, shape index: {}]
  %s6 = sld [smem:[#allocation0]]
  $region30: #{gpt2_forward.11} parent=0
    _
  %s8 = ssub.s32 1, %s6
  %s9 = scalar_select 0, %s8, %s6
  // Predicated region
  $region2: #{gpt2_forward.11} parent=0 // pred_check
    _
  $region3: #{gpt2_forward.11} parent=0 // pred_check_branch
    %11 = sbr.rel (0) target = $region5
  $region4: #{gpt2_forward.11} parent=0 // pred_region
    _
  $region5: #{gpt2_forward.11} parent=0 // pred_fallthru
    _
  // Predicated region
  $region6: #{gpt2_forward.11} parent=0 // pred_check
    _
  $region7: #{gpt2_forward.11} parent=0 // pred_check_branch
    %13 = sbr.rel (0) target = $region9
  $region8: #{gpt2_forward.11} parent=0 // pred_region
    _
  $region9: #{gpt2_forward.11} parent=0 // pred_fallthru
    _
  // Predicated region
  $region10: #{gpt2_forward.11} parent=0 // pred_check
    _
  $region11: #{gpt2_forward.11} parent=0 // pred_check_branch
    %15 = sbr.rel (0) target = $region13
  $region12: #{gpt2_forward.11} parent=0 // pred_region
    _
  $region13: #{gpt2_forward.11} parent=0 // pred_fallthru
    _
  // Predicated region
  $region14: #{gpt2_forward.11} parent=0 // pred_check
    _
  $region15: #{gpt2_forward.11} parent=0 // pred_check_branch
    %17 = sbr.rel (0) target = $region17
  $region16: #{gpt2_forward.11} parent=0 // pred_region
    _
  $region17: #{gpt2_forward.11} parent=0 // pred_fallthru
    _
  // Predicated region
  $region18: #{gpt2_forward.11} parent=0 // pred_check
    _
  $region19: #{gpt2_forward.11} parent=0 // pred_check_branch
    %19 = sbr.rel (0) target = $region21
  $region20: #{gpt2_forward.11} parent=0 // pred_region
    _
  $region21: #{gpt2_forward.11} parent=0 // pred_fallthru
    _
  %v21 = vld [vmem:[%s0] sm:$0xf]
  %v22 = vld [vmem:[%s0 + $0x4] sm:$0xf]
  %v23 = vunpack.c.l.bf16 %v21
  %v24 = vunpack.c.l.bf16 %v22
  %vm25 = vcmask 261120
  %v26 = vsel %vm25, %v23, 0.0
  %27 = vadd.xlane.f32.xlu0 %v26
  %v28 = vpop.xlane.xlu0 %27
  %v29 = vsel %vm25, %v24, 0.0
  %30 = vadd.xlane.f32.xlu0 %v29
  %v31 = vpop.xlane.xlu0 %30
  %v32 = vrcp.pop 32.0
  %v33 = vmul.f32 %v28, %v32
  %v34 = vmul.f32 %v31, %v32
  %v35 = vsub.f32 %v23, %v33
  %v36 = vsub.f32 %v24, %v34
  %v37 = vmul.f32 %v35, %v35
  %v38 = vmul.f32 %v36, %v36
  %v39 = vsel %vm25, %v37, 0.0
  %40 = vadd.xlane.f32.xlu0 %v39
  %v41 = vpop.xlane.xlu0 %40
  %v42 = vsel %vm25, %v38, 0.0
  %43 = vadd.xlane.f32.xlu0 %v42
  %v44 = vpop.xlane.xlu0 %43
  %v45 = vmul.f32 %v41, %v32
  %v46 = vmul.f32 %v44, %v32
  %v47 = vadd.f32 %v45, 1e-05
  %v48 = vadd.f32 %v46, 1e-05
  %v49 = vrsqrt.pop %v47
  %v50 = vrsqrt.pop %v48
  %v51 = vmul.f32 %v35, %v49
  %v52 = vmul.f32 %v36, %v50
  %v53 = vld [vmem:[%s1] sm:$0x1]
  %v55 = vlaneseq
  %v56 = vshrl.u32 %v55, 7
  %v57 = vsub.s32 0, %v56
  %v58 = vrot.slane %v53, %v57
  %v60 = vmul.f32 %v51, %v58
  %v61 = vmul.f32 %v52, %v58
  %v62 = vld [vmem:[%s2] sm:$0x1]
  %v64 = vlaneseq
  %v65 = vshrl.u32 %v64, 7
  %v66 = vsub.s32 0, %v65
  %v67 = vrot.slane %v62, %v66
  %v69 = vadd.f32 %v60, %v67
  %v70 = vadd.f32 %v61, %v67
  %v71 = vpack.c.bf16 %v70, %v69
  %v72 = vld [vmem:[%s3] sm:$0xf]
  %v73 = vld [vmem:[%s3 + $0x4] sm:$0xf]
  %v74 = vld [vmem:[%s3 + $0x8] sm:$0xf]
  %v75 = vld [vmem:[%s3 + $0xc] sm:$0xf]
  %v76 = vld [vmem:[%s4] sm:$0x1]
  %v78 = vlaneseq
  %v79 = vshrl.u32 %v78, 7
  %v80 = vsub.s32 0, %v79
  %v81 = vrot.slane %v76, %v80
  %v87 = vunpack.c.l.b16 %v72
  %v88 = vunpack.c.l.b16 %v73
  %v89 = vunpack.c.l.b16 %v74
  %v90 = vunpack.c.l.b16 %v75
  %v91 = vpack.c.b16 %v88, %v87
  %v92 = vpack.c.b16 %v90, %v89
  %v96 = vsel %vm25, %v71, 0
  %98 = vmatprep.subr.bf16.mxu0 0
  %99 = vmatpush1.bf16.msra.mxu0 0
  %100 = vmatprep.subr.bf16.mxu0 0
  %101 = vmatpush1.bf16.msra.mxu0 0
  %102 = vmatprep.subr.bf16.mxu0 0
  %103 = vmatpush1.bf16.msra.mxu0 0
  %104 = vmatprep.subr.bf16.mxu0 0
  %105 = vmatpush1.bf16.msra.mxu0 0
  %106 = vmatprep.subr.bf16.mxu0 0
  %107 = vmatpush1.bf16.msra.mxu0 0
  %108 = vmatprep.subr.bf16.mxu0 0
  %109 = vmatpush1.bf16.msra.mxu0 0
  %110 = vmatprep.subr.bf16.mxu0 0
  %111 = vmatpush1.bf16.msra.mxu0 %v92
  %112 = vmatprep.subr.bf16.mxu0 0
  %113 = vmatpush1.bf16.msra.mxu0 %v91
  %114 = vmatprep.subr.bf16.mxu0 0
  %115 = vmatpush2.bf16.msra.mxu0 0
  %116 = vmatprep.subr.bf16.mxu0 0
  %117 = vmatpush2.bf16.msra.mxu0 0
  %118 = vmatprep.subr.bf16.mxu0 0
  %119 = vmatpush2.bf16.msra.mxu0 0
  %120 = vmatprep.subr.bf16.mxu0 0
  %121 = vmatpush2.bf16.msra.mxu0 0
  %122 = vmatprep.subr.bf16.mxu0 0
  %123 = vmatpush2.bf16.msra.mxu0 0
  %124 = vmatprep.subr.bf16.mxu0 0
  %125 = vmatpush2.bf16.msra.mxu0 0
  %126 = vmatprep.subr.bf16.mxu0 0
  %127 = vmatpush2.bf16.msra.mxu0 0
  %128 = vmatprep.subr.bf16.mxu0 0
  %129 = vmatpush2.bf16.msra.mxu0 0
  %130 = vmatprep.mubr.bf16.mxu0 0
  %131 = vmatmul.mubr.bf16.gmra.mxu0 %v96
  %v132 = vpop.f32.mrf.mxu0
  %v133 = vadd.f32 %v81, %v132
  %v134 = vpop.f32.mrf.mxu0
  %v135 = vpop.f32.mrf.mxu0
  %v136 = vadd.f32 %v81, %v135
  %v137 = vpop.f32.mrf.mxu0
  %138 = vdwg.mxu0
  %v139 = vpack.c.bf16 %v136, %v133
  %v141 = vunpack.c.l.b16 %v139
  %v142 = vunpack.c.h.b16 %v139
  %v143 = vpack.c.b16 %v141, %v141
  %v144 = vpack.c.b16 %v142, %v142
  %vm147 = vcmask 781312
  %148 = vst.msk [vmem:[%s5] sm:$0xf] %vm147, %v143
  %149 = vst.msk [vmem:[%s5 + $0x4] sm:$0xf] %vm147, %v144
  // Predicated region
  $region22: #{gpt2_forward.11} parent=0 // pred_check
    _
  $region23: #{gpt2_forward.11} parent=0 // pred_check_branch
    %151 = sbr.rel (0) target = $region25
  $region24: #{gpt2_forward.11} parent=0 // pred_region
    _
  $region25: #{gpt2_forward.11} parent=0 // pred_fallthru
    _
  // Predicated region
  $region26: #{gpt2_forward.11} parent=0 // pred_check
    _
  $region27: #{gpt2_forward.11} parent=0 // pred_check_branch
    %153 = sbr.rel (0) target = $region29
  $region28: #{gpt2_forward.11} parent=0 // pred_region
    _
  $region29: #{gpt2_forward.11} parent=0 // pred_fallthru
    _

// kernel: gpt2_forward.14
$region0: #{gpt2_forward.14}
  #allocation0 [shape = 'u32[]', space=smem, size = 0x4, offset = 0x4, fixed_abs, tag = 'smem constant byte address 0x4 - core index']
  #allocation1 [shape = 'u32[144,128]{1,0:T(1,128)}', space=vmem, size = 0x12000, scoped, tag = 'internal scratch']
  %s0 = inlined_call_operand.vmem [shape: bf16[16,32], index: 0, kind: input, shape index: {}]
  %s1 = inlined_call_operand.vmem [shape: f32[1,32], index: 1, kind: input, shape index: {}]
  %s2 = inlined_call_operand.vmem [shape: f32[1,32], index: 2, kind: input, shape index: {}]
  %s3 = inlined_call_operand.vmem [shape: bf16[32,128], index: 3, kind: input, shape index: {}]
  %s4 = inlined_call_operand.vmem [shape: f32[1,128], index: 4, kind: input, shape index: {}]
  %s5 = inlined_call_operand.vmem [shape: bf16[16,128], index: 5, kind: output, shape index: {}]
  %s6 = sld [smem:[#allocation0]]
  $region30: #{gpt2_forward.14} parent=0
    _
  %s8 = ssub.s32 1, %s6
  %s9 = scalar_select 0, %s8, %s6
  // Predicated region
  $region2: #{gpt2_forward.14} parent=0 // pred_check
    _
  $region3: #{gpt2_forward.14} parent=0 // pred_check_branch
    %11 = sbr.rel (0) target = $region5
  $region4: #{gpt2_forward.14} parent=0 // pred_region
    _
  $region5: #{gpt2_forward.14} parent=0 // pred_fallthru
    _
  // Predicated region
  $region6: #{gpt2_forward.14} parent=0 // pred_check
    _
  $region7: #{gpt2_forward.14} parent=0 // pred_check_branch
    %13 = sbr.rel (0) target = $region9
  $region8: #{gpt2_forward.14} parent=0 // pred_region
    _
  $region9: #{gpt2_forward.14} parent=0 // pred_fallthru
    _
  // Predicated region
  $region10: #{gpt2_forward.14} parent=0 // pred_check
    _
  $region11: #{gpt2_forward.14} parent=0 // pred_check_branch
    %15 = sbr.rel (0) target = $region13
  $region12: #{gpt2_forward.14} parent=0 // pred_region
    _
  $region13: #{gpt2_forward.14} parent=0 // pred_fallthru
    _
  // Predicated region
  $region14: #{gpt2_forward.14} parent=0 // pred_check
    _
  $region15: #{gpt2_forward.14} parent=0 // pred_check_branch
    %17 = sbr.rel (0) target = $region17
  $region16: #{gpt2_forward.14} parent=0 // pred_region
    _
  $region17: #{gpt2_forward.14} parent=0 // pred_fallthru
    _
  // Predicated region
  $region18: #{gpt2_forward.14} parent=0 // pred_check
    _
  $region19: #{gpt2_forward.14} parent=0 // pred_check_branch
    %19 = sbr.rel (0) target = $region21
  $region20: #{gpt2_forward.14} parent=0 // pred_region
    _
  $region21: #{gpt2_forward.14} parent=0 // pred_fallthru
    _
  %v21 = vld [vmem:[%s0] sm:$0xf]
  %v22 = vld [vmem:[%s0 + $0x4] sm:$0xf]
  %v23 = vunpack.c.l.bf16 %v21
  %v24 = vunpack.c.l.bf16 %v22
  %vm25 = vcmask 261120
  %v26 = vsel %vm25, %v23, 0.0
  %27 = vadd.xlane.f32.xlu0 %v26
  %v28 = vpop.xlane.xlu0 %27
  %v29 = vsel %vm25, %v24, 0.0
  %30 = vadd.xlane.f32.xlu0 %v29
  %v31 = vpop.xlane.xlu0 %30
  %v32 = vrcp.pop 32.0
  %v33 = vmul.f32 %v28, %v32
  %v34 = vmul.f32 %v31, %v32
  %v35 = vsub.f32 %v23, %v33
  %v36 = vsub.f32 %v24, %v34
  %v37 = vmul.f32 %v35, %v35
  %v38 = vmul.f32 %v36, %v36
  %v39 = vsel %vm25, %v37, 0.0
  %40 = vadd.xlane.f32.xlu0 %v39
  %v41 = vpop.xlane.xlu0 %40
  %v42 = vsel %vm25, %v38, 0.0
  %43 = vadd.xlane.f32.xlu0 %v42
  %v44 = vpop.xlane.xlu0 %43
  %v45 = vmul.f32 %v41, %v32
  %v46 = vmul.f32 %v44, %v32
  %v47 = vadd.f32 %v45, 1e-05
  %v48 = vadd.f32 %v46, 1e-05
  %v49 = vrsqrt.pop %v47
  %v50 = vrsqrt.pop %v48
  %v51 = vmul.f32 %v35, %v49
  %v52 = vmul.f32 %v36, %v50
  %v53 = vld [vmem:[%s1] sm:$0x1]
  %v55 = vlaneseq
  %v56 = vshrl.u32 %v55, 7
  %v57 = vsub.s32 0, %v56
  %v58 = vrot.slane %v53, %v57
  %v60 = vmul.f32 %v51, %v58
  %v61 = vmul.f32 %v52, %v58
  %v62 = vld [vmem:[%s2] sm:$0x1]
  %v64 = vlaneseq
  %v65 = vshrl.u32 %v64, 7
  %v66 = vsub.s32 0, %v65
  %v67 = vrot.slane %v62, %v66
  %v69 = vadd.f32 %v60, %v67
  %v70 = vadd.f32 %v61, %v67
  %v71 = vpack.c.bf16 %v70, %v69
  %v72 = vld [vmem:[%s3] sm:$0xf]
  %v73 = vld [vmem:[%s3 + $0x4] sm:$0xf]
  %v74 = vld [vmem:[%s3 + $0x8] sm:$0xf]
  %v75 = vld [vmem:[%s3 + $0xc] sm:$0xf]
  %v76 = vld [vmem:[%s4] sm:$0x1]
  %v78 = vlaneseq
  %v79 = vshrl.u32 %v78, 7
  %v80 = vsub.s32 0, %v79
  %v81 = vrot.slane %v76, %v80
  %v87 = vunpack.c.l.b16 %v72
  %v88 = vunpack.c.l.b16 %v73
  %v89 = vunpack.c.l.b16 %v74
  %v90 = vunpack.c.l.b16 %v75
  %v91 = vpack.c.b16 %v88, %v87
  %v92 = vpack.c.b16 %v90, %v89
  %v96 = vsel %vm25, %v71, 0
  %98 = vmatprep.subr.bf16.mxu0 0
  %99 = vmatpush1.bf16.msra.mxu0 0
  %100 = vmatprep.subr.bf16.mxu0 0
  %101 = vmatpush1.bf16.msra.mxu0 0
  %102 = vmatprep.subr.bf16.mxu0 0
  %103 = vmatpush1.bf16.msra.mxu0 0
  %104 = vmatprep.subr.bf16.mxu0 0
  %105 = vmatpush1.bf16.msra.mxu0 0
  %106 = vmatprep.subr.bf16.mxu0 0
  %107 = vmatpush1.bf16.msra.mxu0 0
  %108 = vmatprep.subr.bf16.mxu0 0
  %109 = vmatpush1.bf16.msra.mxu0 0
  %110 = vmatprep.subr.bf16.mxu0 0
  %111 = vmatpush1.bf16.msra.mxu0 %v92
  %112 = vmatprep.subr.bf16.mxu0 0
  %113 = vmatpush1.bf16.msra.mxu0 %v91
  %114 = vmatprep.subr.bf16.mxu0 0
  %115 = vmatpush2.bf16.msra.mxu0 0
  %116 = vmatprep.subr.bf16.mxu0 0
  %117 = vmatpush2.bf16.msra.mxu0 0
  %118 = vmatprep.subr.bf16.mxu0 0
  %119 = vmatpush2.bf16.msra.mxu0 0
  %120 = vmatprep.subr.bf16.mxu0 0
  %121 = vmatpush2.bf16.msra.mxu0 0
  %122 = vmatprep.subr.bf16.mxu0 0
  %123 = vmatpush2.bf16.msra.mxu0 0
  %124 = vmatprep.subr.bf16.mxu0 0
  %125 = vmatpush2.bf16.msra.mxu0 0
  %126 = vmatprep.subr.bf16.mxu0 0
  %127 = vmatpush2.bf16.msra.mxu0 0
  %128 = vmatprep.subr.bf16.mxu0 0
  %129 = vmatpush2.bf16.msra.mxu0 0
  %130 = vmatprep.mubr.bf16.mxu0 0
  %131 = vmatmul.mubr.bf16.gmra.mxu0 %v96
  %v132 = vpop.f32.mrf.mxu0
  %v133 = vadd.f32 %v81, %v132
  %v134 = vpop.f32.mrf.mxu0
  %v135 = vpop.f32.mrf.mxu0
  %v136 = vadd.f32 %v81, %v135
  %v137 = vpop.f32.mrf.mxu0
  %138 = vdwg.mxu0
  %v139 = vmul.f32 %v133, 0.5
  %v140 = vmul.f32 %v136, 0.5
  %v141 = vmul.f32 %v133, 0.7978846
  %v142 = vmul.f32 %v136, 0.7978846
  %v143 = vmul.f32 %v133, 0.044715
  %v144 = vmul.f32 %v136, 0.044715
  %v145 = vmul.f32 %v143, %v133
  %v146 = vmul.f32 %v144, %v136
  %v147 = vadd.f32 %v145, 1.0
  %v148 = vadd.f32 %v146, 1.0
  %v149 = vmul.f32 %v141, %v147
  %v150 = vmul.f32 %v142, %v148
  %v151 = vtanh.pop %v149
  %v152 = vtanh.pop %v150
  %v153 = vadd.f32 %v151, 1.0
  %v154 = vadd.f32 %v152, 1.0
  %v155 = vmul.f32 %v139, %v153
  %v156 = vmul.f32 %v140, %v154
  %v157 = vpack.c.bf16 %v156, %v155
  %v159 = vunpack.c.l.b16 %v157
  %v160 = vunpack.c.h.b16 %v157
  %v161 = vpack.c.b16 %v159, %v159
  %v162 = vpack.c.b16 %v160, %v160
  %165 = vst [vmem:[%s5] sm:$0xf] %v161
  %166 = vst [vmem:[%s5 + $0x4] sm:$0xf] %v162
  // Predicated region
  $region22: #{gpt2_forward.14} parent=0 // pred_check
    _
  $region23: #{gpt2_forward.14} parent=0 // pred_check_branch
    %168 = sbr.rel (0) target = $region25
  $region24: #{gpt2_forward.14} parent=0 // pred_region
    _
  $region25: #{gpt2_forward.14} parent=0 // pred_fallthru
    _
  // Predicated region
  $region26: #{gpt2_forward.14} parent=0 // pred_check
    _
  $region27: #{gpt2_forward.14} parent=0 // pred_check_branch
    %170 = sbr.rel (0) target = $region29
  $region28: #{gpt2_forward.14} parent=0 // pred_region
    _
  $region29: #{gpt2_forward.14} parent=0 // pred_fallthru
    _

// kernel: gpt2_forward.12
$region0: #{gpt2_forward.12}
  #allocation0 [shape = 'u32[]', space=smem, size = 0x4, offset = 0x4, fixed_abs, tag = 'smem constant byte address 0x4 - core index']
  #allocation1 [shape = 'u32[144,128]{1,0:T(1,128)}', space=vmem, size = 0x12000, scoped, tag = 'internal scratch']
  %s0 = inlined_call_operand.vmem [shape: bf16[16,96], index: 0, kind: input, shape index: {}]
  %s1 = inlined_call_operand.vmem [shape: bf16[16,32], index: 1, kind: output, shape index: {}]
  %s2 = sld [smem:[#allocation0]]
  $region37: #{gpt2_forward.12} parent=0
    _
  %s4 = ssub.s32 1, %s2
  %s5 = scalar_select 0, %s4, %s2
  loop: start=0, step=1, limit=4
  $region2: #{gpt2_forward.12} parent=0 // loop_pre_header
    _
  $region3: #{gpt2_forward.12} parent=0 // loop_header
    %s7 = sphi 0, %s11
    %p8 = scmp.ge.s32.totalorder %s7, 4
    %s17 = sphi 0, %s19
    %s20 = sphi 0, %s17
    %s21 = sphi 0, %s20
    %s37 = sphi 0, %s21
    %s43 = sphi 0, %s45
    %s46 = sphi 0, %s43
    %s47 = sphi 0, %s46
    %s63 = sphi 0, %s47
  $region4: #{gpt2_forward.12} parent=0 // loop_header_branch
    %10 = sbr.rel (%p8) target = $region8
  $region5: #{gpt2_forward.12} parent=0 // loop_body
    %s12 = ssub.s32 %s7, 1
    %s13 = ssub.s32 %s7, 2
    %s14 = sadd.s32 %s7, 1
    %s15 = ssub.s32 %s7, %s14
    %p16 = scmp.eq.s32.totalorder %s15, 0
    %s18 = sadd.s32 %s17, 1
    %s19 = scalar_select %p16, %s17, %s18
    %p22 = pneg %p16
    %p23 = scmp.eq.s32.totalorder %s7, 1
    %p24 = por %p22, %p23
    %p25 = scmp.ne.s32.totalorder %s17, %s20
    %p26 = scmp.eq.s32.totalorder %s7, 0
    %p27 = por %p25, %p26
    %p28 = scmp.ne.s32.totalorder %s17, %s20
    %p29 = scmp.eq.s32.totalorder %s12, 1
    %p30 = por %p28, %p29
    %p31 = scmp.ne.s32.totalorder %s20, %s21
    %p32 = scmp.eq.s32.totalorder %s12, 0
    %p33 = por %p31, %p32
    %p34 = scmp.ne.s32.totalorder %s20, %s21
    %p35 = scmp.eq.s32.totalorder %s13, 1
    %p36 = por %p34, %p35
    %p38 = scmp.ne.s32.totalorder %s21, %s37
    %p39 = scmp.eq.s32.totalorder %s13, 0
    %p40 = por %p38, %p39
    %s41 = ssub.s32 %s7, %s14
    %p42 = scmp.eq.s32.totalorder %s41, 0
    %s44 = sadd.s32 %s43, 1
    %s45 = scalar_select %p42, %s43, %s44
    %p48 = pneg %p42
    %p49 = scmp.eq.s32.totalorder %s7, 1
    %p50 = por %p48, %p49
    %p51 = scmp.ne.s32.totalorder %s43, %s46
    %p52 = scmp.eq.s32.totalorder %s7, 0
    %p53 = por %p51, %p52
    %p54 = scmp.ne.s32.totalorder %s43, %s46
    %p55 = scmp.eq.s32.totalorder %s12, 1
    %p56 = por %p54, %p55
    %p57 = scmp.ne.s32.totalorder %s46, %s47
    %p58 = scmp.eq.s32.totalorder %s12, 0
    %p59 = por %p57, %p58
    %p60 = scmp.ne.s32.totalorder %s46, %s47
    %p61 = scmp.eq.s32.totalorder %s13, 1
    %p62 = por %p60, %p61
    %p64 = scmp.ne.s32.totalorder %s47, %s63
    %p65 = scmp.eq.s32.totalorder %s13, 0
    %p66 = por %p64, %p65
    %p67 = scmp.le.s32.totalorder 1, %s7
    %p68 = scmp.lt.s32.totalorder %s7, 3
    %p69 = pnand %p67, %p68
    %p70 = pneg %p69
    // Predicated region
    $region9: #{gpt2_forward.12} parent=5 // pred_check
      _
    $region10: #{gpt2_forward.12} parent=5 // pred_check_branch
      %72 = sbr.rel (%p69) target = $region12
    $region11: #{gpt2_forward.12} parent=5 // pred_region
      %s73 = ssub.s32 %s7, 1
    $region12: #{gpt2_forward.12} parent=5 // pred_fallthru
      _
    %p74 = scmp.lt.s32.totalorder %s7, 2
    // Predicated region
    $region13: #{gpt2_forward.12} parent=5 // pred_check
      %p75 = pneg %p74
    $region14: #{gpt2_forward.12} parent=5 // pred_check_branch
      %77 = sbr.rel (%p75) target = $region16
    $region15: #{gpt2_forward.12} parent=5 // pred_region
      // Predicated region
      $region17: #{gpt2_forward.12} parent=15 // pred_check
        %p78 = pneg %p27
      $region18: #{gpt2_forward.12} parent=15 // pred_check_branch
        %80 = sbr.rel (%p78) target = $region20
      $region19: #{gpt2_forward.12} parent=15 // pred_region
        %p81 = scmp.lt.s32.totalorder %s7, 1
        %s82 = scalar_select %p81, %s7, 1
        %s83 = smul.addr %s82, 4
        %s84 = scalar_lea.vmem %s0, %s83
      $region20: #{gpt2_forward.12} parent=15 // pred_fallthru
        _
    $region16: #{gpt2_forward.12} parent=5 // pred_fallthru
      _
    %p85 = scmp.le.s32.totalorder 1, %s7
    %p86 = scmp.lt.s32.totalorder %s7, 3
    %p87 = pnand %p85, %p86
    %p88 = pneg %p87
    // Predicated region
    $region21: #{gpt2_forward.12} parent=5 // pred_check
      _
    $region22: #{gpt2_forward.12} parent=5 // pred_check_branch
      %90 = sbr.rel (%p87) target = $region24
    $region23: #{gpt2_forward.12} parent=5 // pred_region
      %s91 = ssub.s32 %s7, 1
      %p92 = scmp.lt.s32.totalorder %s12, 1
      %s93 = scalar_select %p92, %s12, 1
      %s94 = smul.addr %s93, 4
      %s95 = scalar_lea.vmem %s0, %s94
      %p96 = pneg %p33
      %p97 = pneg %p30
      %p98 = pneg %p59
      %p99 = pneg %p56
      %p100 = scmp.lt.s32.totalorder %s12, 1
      %s101 = scalar_select %p100, %s12, 1
      %s102 = smul.addr %s101, 4
      %s103 = scalar_lea.vmem %s1, %s102
      %p104 = scmp.lt.s32.totalorder %s12, 1
      %s105 = scalar_select %p104, %s12, 1
      %s106 = smul.addr %s105, 4
      %s107 = scalar_lea.vmem %s0, %s106
      %p108 = scmp.lt.s32.totalorder %s12, 1
      %s109 = scalar_select %p108, %s12, 1
      %s110 = smul.addr %s109, 4
      %s111 = scalar_lea.vmem %s1, %s110
      %v113 = vlaneseq
      %v114 = vshrl.u32 %v113, 7
      %v115 = vlaneseq
      %v116 = vand.u32 %v115, 127
      %vm117 = vcmp.gt.s32.totalorder %v116, %v114
      %v118 = vld [vmem:[%s107] sm:$0xf]
      %v120 = vunpack.c.l.b16 %v118
      %v121 = vpack.c.b16 %v120, %v120
      %122 = vrot.lane.b32.xlu0 %v121, 96
      %v123 = vpop.permute.xlu0 %122
      %vm124 = vcmask 64512
      %v126 = vsel %vm124, %v118, 0
      %v129 = vsel %vm124, %v123, 0
      %131 = vmatprep.subr.bf16.mxu0 0
      %132 = vmatpush1.bf16.xpose.msra.mxu0 0
      %133 = vmatprep.subr.bf16.mxu0 0
      %134 = vmatpush1.bf16.xpose.msra.mxu0 0
      %135 = vmatprep.subr.bf16.mxu0 0
      %136 = vmatpush1.bf16.xpose.msra.mxu0 0
      %137 = vmatprep.subr.bf16.mxu0 0
      %138 = vmatpush1.bf16.xpose.msra.mxu0 0
      %139 = vmatprep.subr.bf16.mxu0 0
      %140 = vmatpush1.bf16.xpose.msra.mxu0 0
      %141 = vmatprep.subr.bf16.mxu0 0
      %142 = vmatpush1.bf16.xpose.msra.mxu0 0
      %143 = vmatprep.subr.bf16.mxu0 0
      %144 = vmatpush1.bf16.xpose.msra.mxu0 0
      %145 = vmatprep.subr.bf16.mxu0 0
      %146 = vmatpush1.bf16.xpose.msra.mxu0 %v129
      %147 = vmatprep.subr.bf16.mxu0 0
      %148 = vmatpush2.bf16.xpose.msra.mxu0 0
      %149 = vmatprep.subr.bf16.mxu0 0
      %150 = vmatpush2.bf16.xpose.msra.mxu0 0
      %151 = vmatprep.subr.bf16.mxu0 0
      %152 = vmatpush2.bf16.xpose.msra.mxu0 0
      %153 = vmatprep.subr.bf16.mxu0 0
      %154 = vmatpush2.bf16.xpose.msra.mxu0 0
      %155 = vmatprep.subr.bf16.mxu0 0
      %156 = vmatpush2.bf16.xpose.msra.mxu0 0
      %157 = vmatprep.subr.bf16.mxu0 0
      %158 = vmatpush2.bf16.xpose.msra.mxu0 0
      %159 = vmatprep.subr.bf16.mxu0 0
      %160 = vmatpush2.bf16.xpose.msra.mxu0 0
      %161 = vmatprep.subr.bf16.mxu0 0
      %162 = vmatpush2.bf16.xpose.msra.mxu0 0
      %163 = vmatprep.mubr.bf16.mxu0 0
      %164 = vmatmul.mubr.bf16.gmra.mxu0 %v126
      %v165 = vpop.f32.mrf.mxu0
      %v166 = vadd.f32 0.0, %v165
      %v167 = vpop.f32.mrf.mxu0
      %v168 = vpop.f32.mrf.mxu0
      %v169 = vpop.f32.mrf.mxu0
      %170 = vdwg.mxu0
      %v171 = vmul.f32 %v166, 0.35355338
      %v172 = vsel %vm117, -10000.0, %v171
      %v173 = vsel %vm124, %v172, -inf
      %174 = vmax.xlane.f32.xlu0 %v173
      %v175 = vpop.xlane.xlu0 %174
      %v176 = vsub.f32 %v172, %v175
      %v177 = vmul.f32 %v176, 1.442695
      %v178 = vpow.pop %v177
      %v179 = vsel %vm124, %v178, 0.0
      %180 = vadd.xlane.f32.xlu0 %v179
      %v181 = vpop.xlane.xlu0 %180
      %v182 = vrcp.pop %v181
      %v183 = vmul.f32 %v178, %v182
      %v184 = vpack.c.bf16 %v183, %v183
      %185 = vrot.lane.b32.xlu0 %v121, 64
      %v186 = vpop.permute.xlu0 %185
      %v188 = vsel %vm124, %v184, 0
      %vm190 = vcmask 1043456
      %v192 = vsel %vm190, %v186, 0
      %194 = vmatprep.subr.bf16.mxu0 0
      %195 = vmatpush1.bf16.msra.mxu0 0
      %196 = vmatprep.subr.bf16.mxu0 0
      %197 = vmatpush1.bf16.msra.mxu0 0
      %198 = vmatprep.subr.bf16.mxu0 0
      %199 = vmatpush1.bf16.msra.mxu0 0
      %200 = vmatprep.subr.bf16.mxu0 0
      %201 = vmatpush1.bf16.msra.mxu0 0
      %202 = vmatprep.subr.bf16.mxu0 0
      %203 = vmatpush1.bf16.msra.mxu0 0
      %204 = vmatprep.subr.bf16.mxu0 0
      %205 = vmatpush1.bf16.msra.mxu0 0
      %206 = vmatprep.subr.bf16.mxu0 0
      %207 = vmatpush1.bf16.msra.mxu0 0
      %208 = vmatprep.subr.bf16.mxu0 0
      %209 = vmatpush1.bf16.msra.mxu0 %v192
      %210 = vmatprep.subr.bf16.mxu0 0
      %211 = vmatpush2.bf16.msra.mxu0 0
      %212 = vmatprep.subr.bf16.mxu0 0
      %213 = vmatpush2.bf16.msra.mxu0 0
      %214 = vmatprep.subr.bf16.mxu0 0
      %215 = vmatpush2.bf16.msra.mxu0 0
      %216 = vmatprep.subr.bf16.mxu0 0
      %217 = vmatpush2.bf16.msra.mxu0 0
      %218 = vmatprep.subr.bf16.mxu0 0
      %219 = vmatpush2.bf16.msra.mxu0 0
      %220 = vmatprep.subr.bf16.mxu0 0
      %221 = vmatpush2.bf16.msra.mxu0 0
      %222 = vmatprep.subr.bf16.mxu0 0
      %223 = vmatpush2.bf16.msra.mxu0 0
      %224 = vmatprep.subr.bf16.mxu0 0
      %225 = vmatpush2.bf16.msra.mxu0 0
      %226 = vmatprep.mubr.bf16.mxu0 0
      %227 = vmatmul.mubr.bf16.gmra.mxu0 %v188
      %v228 = vpop.f32.mrf.mxu0
      %v229 = vadd.f32 0.0, %v228
      %v230 = vpop.f32.mrf.mxu0
      %v231 = vpop.f32.mrf.mxu0
      %v232 = vpop.f32.mrf.mxu0
      %233 = vdwg.mxu0
      %v234 = vpack.c.bf16 %v229, %v229
      %vm235 = vcmask 60416
      %236 = vst.msk [vmem:[%s111] sm:$0xf] %vm235, %v234
      %v237 = vld [vmem:[%s107] sm:$0xf]
      %v239 = vunpack.c.l.b16 %v237
      %v240 = vpack.c.b16 %v239, %v239
      %241 = vrot.lane.b32.xlu0 %v240, 120
      %v242 = vpop.permute.xlu0 %241
      %243 = vrot.lane.b32.xlu0 %v240, 88
      %v244 = vpop.permute.xlu0 %243
      %v246 = vsel %vm124, %v242, 0
      %v249 = vsel %vm124, %v244, 0
      %251 = vmatprep.subr.bf16.mxu0 0
      %252 = vmatpush1.bf16.xpose.msra.mxu0 0
      %253 = vmatprep.subr.bf16.mxu0 0
      %254 = vmatpush1.bf16.xpose.msra.mxu0 0
      %255 = vmatprep.subr.bf16.mxu0 0
      %256 = vmatpush1.bf16.xpose.msra.mxu0 0
      %257 = vmatprep.subr.bf16.mxu0 0
      %258 = vmatpush1.bf16.xpose.msra.mxu0 0
      %259 = vmatprep.subr.bf16.mxu0 0
      %260 = vmatpush1.bf16.xpose.msra.mxu0 0
      %261 = vmatprep.subr.bf16.mxu0 0
      %262 = vmatpush1.bf16.xpose.msra.mxu0 0
      %263 = vmatprep.subr.bf16.mxu0 0
      %264 = vmatpush1.bf16.xpose.msra.mxu0 0
      %265 = vmatprep.subr.bf16.mxu0 0
      %266 = vmatpush1.bf16.xpose.msra.mxu0 %v249
      %267 = vmatprep.subr.bf16.mxu0 0
      %268 = vmatpush2.bf16.xpose.msra.mxu0 0
      %269 = vmatprep.subr.bf16.mxu0 0
      %270 = vmatpush2.bf16.xpose.msra.mxu0 0
      %271 = vmatprep.subr.bf16.mxu0 0
      %272 = vmatpush2.bf16.xpose.msra.mxu0 0
      %273 = vmatprep.subr.bf16.mxu0 0
      %274 = vmatpush2.bf16.xpose.msra.mxu0 0
      %275 = vmatprep.subr.bf16.mxu0 0
      %276 = vmatpush2.bf16.xpose.msra.mxu0 0
      %277 = vmatprep.subr.bf16.mxu0 0
      %278 = vmatpush2.bf16.xpose.msra.mxu0 0
      %279 = vmatprep.subr.bf16.mxu0 0
      %280 = vmatpush2.bf16.xpose.msra.mxu0 0
      %281 = vmatprep.subr.bf16.mxu0 0
      %282 = vmatpush2.bf16.xpose.msra.mxu0 0
      %283 = vmatprep.mubr.bf16.mxu0 0
      %284 = vmatmul.mubr.bf16.gmra.mxu0 %v246
      %v285 = vpop.f32.mrf.mxu0
      %v286 = vadd.f32 0.0, %v285
      %v287 = vpop.f32.mrf.mxu0
      %v288 = vpop.f32.mrf.mxu0
      %v289 = vpop.f32.mrf.mxu0
      %290 = vdwg.mxu0
      %v291 = vmul.f32 %v286, 0.35355338
      %v292 = vsel %vm117, -10000.0, %v291
      %v293 = vsel %vm124, %v292, -inf
      %294 = vmax.xlane.f32.xlu0 %v293
      %v295 = vpop.xlane.xlu0 %294
      %v296 = vsub.f32 %v292, %v295
      %v297 = vmul.f32 %v296, 1.442695
      %v298 = vpow.pop %v297
      %v299 = vsel %vm124, %v298, 0.0
      %300 = vadd.xlane.f32.xlu0 %v299
      %v301 = vpop.xlane.xlu0 %300
      %v302 = vrcp.pop %v301
      %v303 = vmul.f32 %v298, %v302
      %v304 = vpack.c.bf16 %v303, %v303
      %305 = vrot.lane.b32.xlu0 %v240, 56
      %v306 = vpop.permute.xlu0 %305
      %v308 = vsel %vm124, %v304, 0
      %v311 = vsel %vm190, %v306, 0
      %313 = vmatprep.subr.bf16.mxu0 0
      %314 = vmatpush1.bf16.msra.mxu0 0
      %315 = vmatprep.subr.bf16.mxu0 0
      %316 = vmatpush1.bf16.msra.mxu0 0
      %317 = vmatprep.subr.bf16.mxu0 0
      %318 = vmatpush1.bf16.msra.mxu0 0
      %319 = vmatprep.subr.bf16.mxu0 0
      %320 = vmatpush1.bf16.msra.mxu0 0
      %321 = vmatprep.subr.bf16.mxu0 0
      %322 = vmatpush1.bf16.msra.mxu0 0
      %323 = vmatprep.subr.bf16.mxu0 0
      %324 = vmatpush1.bf16.msra.mxu0 0
      %325 = vmatprep.subr.bf16.mxu0 0
      %326 = vmatpush1.bf16.msra.mxu0 0
      %327 = vmatprep.subr.bf16.mxu0 0
      %328 = vmatpush1.bf16.msra.mxu0 %v311
      %329 = vmatprep.subr.bf16.mxu0 0
      %330 = vmatpush2.bf16.msra.mxu0 0
      %331 = vmatprep.subr.bf16.mxu0 0
      %332 = vmatpush2.bf16.msra.mxu0 0
      %333 = vmatprep.subr.bf16.mxu0 0
      %334 = vmatpush2.bf16.msra.mxu0 0
      %335 = vmatprep.subr.bf16.mxu0 0
      %336 = vmatpush2.bf16.msra.mxu0 0
      %337 = vmatprep.subr.bf16.mxu0 0
      %338 = vmatpush2.bf16.msra.mxu0 0
      %339 = vmatprep.subr.bf16.mxu0 0
      %340 = vmatpush2.bf16.msra.mxu0 0
      %341 = vmatprep.subr.bf16.mxu0 0
      %342 = vmatpush2.bf16.msra.mxu0 0
      %343 = vmatprep.subr.bf16.mxu0 0
      %344 = vmatpush2.bf16.msra.mxu0 0
      %345 = vmatprep.mubr.bf16.mxu0 0
      %346 = vmatmul.mubr.bf16.gmra.mxu0 %v308
      %v347 = vpop.f32.mrf.mxu0
      %v348 = vadd.f32 0.0, %v347
      %v349 = vpop.f32.mrf.mxu0
      %v350 = vpop.f32.mrf.mxu0
      %v351 = vpop.f32.mrf.mxu0
      %352 = vdwg.mxu0
      %v353 = vpack.c.bf16 %v348, %v348
      %v355 = vunpack.c.l.b16 %v353
      %v356 = vpack.c.b16 %v355, %v355
      %357 = vrot.lane.b32.xlu0 %v356, 8
      %v358 = vpop.permute.xlu0 %357
      %vm360 = vcmask 126016
      %361 = vst.msk [vmem:[%s111] sm:$0xf] %vm360, %v358
      %v362 = vld [vmem:[%s107] sm:$0xf]
      %v364 = vunpack.c.l.b16 %v362
      %v365 = vpack.c.b16 %v364, %v364
      %366 = vrot.lane.b32.xlu0 %v365, 112
      %v367 = vpop.permute.xlu0 %366
      %368 = vrot.lane.b32.xlu0 %v365, 80
      %v369 = vpop.permute.xlu0 %368
      %v371 = vsel %vm124, %v367, 0
      %v374 = vsel %vm124, %v369, 0
      %376 = vmatprep.subr.bf16.mxu0 0
      %377 = vmatpush1.bf16.xpose.msra.mxu0 0
      %378 = vmatprep.subr.bf16.mxu0 0
      %379 = vmatpush1.bf16.xpose.msra.mxu0 0
      %380 = vmatprep.subr.bf16.mxu0 0
      %381 = vmatpush1.bf16.xpose.msra.mxu0 0
      %382 = vmatprep.subr.bf16.mxu0 0
      %383 = vmatpush1.bf16.xpose.msra.mxu0 0
      %384 = vmatprep.subr.bf16.mxu0 0
      %385 = vmatpush1.bf16.xpose.msra.mxu0 0
      %386 = vmatprep.subr.bf16.mxu0 0
      %387 = vmatpush1.bf16.xpose.msra.mxu0 0
      %388 = vmatprep.subr.bf16.mxu0 0
      %389 = vmatpush1.bf16.xpose.msra.mxu0 0
      %390 = vmatprep.subr.bf16.mxu0 0
      %391 = vmatpush1.bf16.xpose.msra.mxu0 %v374
      %392 = vmatprep.subr.bf16.mxu0 0
      %393 = vmatpush2.bf16.xpose.msra.mxu0 0
      %394 = vmatprep.subr.bf16.mxu0 0
      %395 = vmatpush2.bf16.xpose.msra.mxu0 0
      %396 = vmatprep.subr.bf16.mxu0 0
      %397 = vmatpush2.bf16.xpose.msra.mxu0 0
      %398 = vmatprep.subr.bf16.mxu0 0
      %399 = vmatpush2.bf16.xpose.msra.mxu0 0
      %400 = vmatprep.subr.bf16.mxu0 0
      %401 = vmatpush2.bf16.xpose.msra.mxu0 0
      %402 = vmatprep.subr.bf16.mxu0 0
      %403 = vmatpush2.bf16.xpose.msra.mxu0 0
      %404 = vmatprep.subr.bf16.mxu0 0
      %405 = vmatpush2.bf16.xpose.msra.mxu0 0
      %406 = vmatprep.subr.bf16.mxu0 0
      %407 = vmatpush2.bf16.xpose.msra.mxu0 0
      %408 = vmatprep.mubr.bf16.mxu0 0
      %409 = vmatmul.mubr.bf16.gmra.mxu0 %v371
      %v410 = vpop.f32.mrf.mxu0
      %v411 = vadd.f32 0.0, %v410
      %v412 = vpop.f32.mrf.mxu0
      %v413 = vpop.f32.mrf.mxu0
      %v414 = vpop.f32.mrf.mxu0
      %415 = vdwg.mxu0
      %v416 = vmul.f32 %v411, 0.35355338
      %v417 = vsel %vm117, -10000.0, %v416
      %v418 = vsel %vm124, %v417, -inf
      %419 = vmax.xlane.f32.xlu0 %v418
      %v420 = vpop.xlane.xlu0 %419
      %v421 = vsub.f32 %v417, %v420
      %v422 = vmul.f32 %v421, 1.442695
      %v423 = vpow.pop %v422
      %v424 = vsel %vm124, %v423, 0.0
      %425 = vadd.xlane.f32.xlu0 %v424
      %v426 = vpop.xlane.xlu0 %425
      %v427 = vrcp.pop %v426
      %v428 = vmul.f32 %v423, %v427
      %v429 = vpack.c.bf16 %v428, %v428
      %430 = vrot.lane.b32.xlu0 %v365, 48
      %v431 = vpop.permute.xlu0 %430
      %v433 = vsel %vm124, %v429, 0
      %v436 = vsel %vm190, %v431, 0
      %438 = vmatprep.subr.bf16.mxu0 0
      %439 = vmatpush1.bf16.msra.mxu0 0
      %440 = vmatprep.subr.bf16.mxu0 0
      %441 = vmatpush1.bf16.msra.mxu0 0
      %442 = vmatprep.subr.bf16.mxu0 0
      %443 = vmatpush1.bf16.msra.mxu0 0
      %444 = vmatprep.subr.bf16.mxu0 0
      %445 = vmatpush1.bf16.msra.mxu0 0
      %446 = vmatprep.subr.bf16.mxu0 0
      %447 = vmatpush1.bf16.msra.mxu0 0
      %448 = vmatprep.subr.bf16.mxu0 0
      %449 = vmatpush1.bf16.msra.mxu0 0
      %450 = vmatprep.subr.bf16.mxu0 0
      %451 = vmatpush1.bf16.msra.mxu0 0
      %452 = vmatprep.subr.bf16.mxu0 0
      %453 = vmatpush1.bf16.msra.mxu0 %v436
      %454 = vmatprep.subr.bf16.mxu0 0
      %455 = vmatpush2.bf16.msra.mxu0 0
      %456 = vmatprep.subr.bf16.mxu0 0
      %457 = vmatpush2.bf16.msra.mxu0 0
      %458 = vmatprep.subr.bf16.mxu0 0
      %459 = vmatpush2.bf16.msra.mxu0 0
      %460 = vmatprep.subr.bf16.mxu0 0
      %461 = vmatpush2.bf16.msra.mxu0 0
      %462 = vmatprep.subr.bf16.mxu0 0
      %463 = vmatpush2.bf16.msra.mxu0 0
      %464 = vmatprep.subr.bf16.mxu0 0
      %465 = vmatpush2.bf16.msra.mxu0 0
      %466 = vmatprep.subr.bf16.mxu0 0
      %467 = vmatpush2.bf16.msra.mxu0 0
      %468 = vmatprep.subr.bf16.mxu0 0
      %469 = vmatpush2.bf16.msra.mxu0 0
      %470 = vmatprep.mubr.bf16.mxu0 0
      %471 = vmatmul.mubr.bf16.gmra.mxu0 %v433
      %v472 = vpop.f32.mrf.mxu0
      %v473 = vadd.f32 0.0, %v472
      %v474 = vpop.f32.mrf.mxu0
      %v475 = vpop.f32.mrf.mxu0
      %v476 = vpop.f32.mrf.mxu0
      %477 = vdwg.mxu0
      %v478 = vpack.c.bf16 %v473, %v473
      %v480 = vunpack.c.l.b16 %v478
      %v481 = vpack.c.b16 %v480, %v480
      %482 = vrot.lane.b32.xlu0 %v481, 16
      %v483 = vpop.permute.xlu0 %482
      %vm485 = vcmask 191616
      %486 = vst.msk [vmem:[%s111] sm:$0xf] %vm485, %v483
      %v487 = vld [vmem:[%s107] sm:$0xf]
      %v489 = vunpack.c.l.b16 %v487
      %v490 = vpack.c.b16 %v489, %v489
      %491 = vrot.lane.b32.xlu0 %v490, 104
      %v492 = vpop.permute.xlu0 %491
      %493 = vrot.lane.b32.xlu0 %v490, 72
      %v494 = vpop.permute.xlu0 %493
      %v496 = vsel %vm124, %v492, 0
      %v499 = vsel %vm124, %v494, 0
      %501 = vmatprep.subr.bf16.mxu0 0
      %502 = vmatpush1.bf16.xpose.msra.mxu0 0
      %503 = vmatprep.subr.bf16.mxu0 0
      %504 = vmatpush1.bf16.xpose.msra.mxu0 0
      %505 = vmatprep.subr.bf16.mxu0 0
      %506 = vmatpush1.bf16.xpose.msra.mxu0 0
      %507 = vmatprep.subr.bf16.mxu0 0
      %508 = vmatpush1.bf16.xpose.msra.mxu0 0
      %509 = vmatprep.subr.bf16.mxu0 0
      %510 = vmatpush1.bf16.xpose.msra.mxu0 0
      %511 = vmatprep.subr.bf16.mxu0 0
      %512 = vmatpush1.bf16.xpose.msra.mxu0 0
      %513 = vmatprep.subr.bf16.mxu0 0
      %514 = vmatpush1.bf16.xpose.msra.mxu0 0
      %515 = vmatprep.subr.bf16.mxu0 0
      %516 = vmatpush1.bf16.xpose.msra.mxu0 %v499
      %517 = vmatprep.subr.bf16.mxu0 0
      %518 = vmatpush2.bf16.xpose.msra.mxu0 0
      %519 = vmatprep.subr.bf16.mxu0 0
      %520 = vmatpush2.bf16.xpose.msra.mxu0 0
      %521 = vmatprep.subr.bf16.mxu0 0
      %522 = vmatpush2.bf16.xpose.msra.mxu0 0
      %523 = vmatprep.subr.bf16.mxu0 0
      %524 = vmatpush2.bf16.xpose.msra.mxu0 0
      %525 = vmatprep.subr.bf16.mxu0 0
      %526 = vmatpush2.bf16.xpose.msra.mxu0 0
      %527 = vmatprep.subr.bf16.mxu0 0
      %528 = vmatpush2.bf16.xpose.msra.mxu0 0
      %529 = vmatprep.subr.bf16.mxu0 0
      %530 = vmatpush2.bf16.xpose.msra.mxu0 0
      %531 = vmatprep.subr.bf16.mxu0 0
      %532 = vmatpush2.bf16.xpose.msra.mxu0 0
      %533 = vmatprep.mubr.bf16.mxu0 0
      %534 = vmatmul.mubr.bf16.gmra.mxu0 %v496
      %v535 = vpop.f32.mrf.mxu0
      %v536 = vadd.f32 0.0, %v535
      %v537 = vpop.f32.mrf.mxu0
      %v538 = vpop.f32.mrf.mxu0
      %v539 = vpop.f32.mrf.mxu0
      %540 = vdwg.mxu0
      %v541 = vmul.f32 %v536, 0.35355338
      %v542 = vsel %vm117, -10000.0, %v541
      %v543 = vsel %vm124, %v542, -inf
      %544 = vmax.xlane.f32.xlu0 %v543
      %v545 = vpop.xlane.xlu0 %544
      %v546 = vsub.f32 %v542, %v545
      %v547 = vmul.f32 %v546, 1.442695
      %v548 = vpow.pop %v547
      %v549 = vsel %vm124, %v548, 0.0
      %550 = vadd.xlane.f32.xlu0 %v549
      %v551 = vpop.xlane.xlu0 %550
      %v552 = vrcp.pop %v551
      %v553 = vmul.f32 %v548, %v552
      %v554 = vpack.c.bf16 %v553, %v553
      %555 = vrot.lane.b32.xlu0 %v490, 40
      %v556 = vpop.permute.xlu0 %555
      %v558 = vsel %vm124, %v554, 0
      %v561 = vsel %vm190, %v556, 0
      %563 = vmatprep.subr.bf16.mxu0 0
      %564 = vmatpush1.bf16.msra.mxu0 0
      %565 = vmatprep.subr.bf16.mxu0 0
      %566 = vmatpush1.bf16.msra.mxu0 0
      %567 = vmatprep.subr.bf16.mxu0 0
      %568 = vmatpush1.bf16.msra.mxu0 0
      %569 = vmatprep.subr.bf16.mxu0 0
      %570 = vmatpush1.bf16.msra.mxu0 0
      %571 = vmatprep.subr.bf16.mxu0 0
      %572 = vmatpush1.bf16.msra.mxu0 0
      %573 = vmatprep.subr.bf16.mxu0 0
      %574 = vmatpush1.bf16.msra.mxu0 0
      %575 = vmatprep.subr.bf16.mxu0 0
      %576 = vmatpush1.bf16.msra.mxu0 0
      %577 = vmatprep.subr.bf16.mxu0 0
      %578 = vmatpush1.bf16.msra.mxu0 %v561
      %579 = vmatprep.subr.bf16.mxu0 0
      %580 = vmatpush2.bf16.msra.mxu0 0
      %581 = vmatprep.subr.bf16.mxu0 0
      %582 = vmatpush2.bf16.msra.mxu0 0
      %583 = vmatprep.subr.bf16.mxu0 0
      %584 = vmatpush2.bf16.msra.mxu0 0
      %585 = vmatprep.subr.bf16.mxu0 0
      %586 = vmatpush2.bf16.msra.mxu0 0
      %587 = vmatprep.subr.bf16.mxu0 0
      %588 = vmatpush2.bf16.msra.mxu0 0
      %589 = vmatprep.subr.bf16.mxu0 0
      %590 = vmatpush2.bf16.msra.mxu0 0
      %591 = vmatprep.subr.bf16.mxu0 0
      %592 = vmatpush2.bf16.msra.mxu0 0
      %593 = vmatprep.subr.bf16.mxu0 0
      %594 = vmatpush2.bf16.msra.mxu0 0
      %595 = vmatprep.mubr.bf16.mxu0 0
      %596 = vmatmul.mubr.bf16.gmra.mxu0 %v558
      %v597 = vpop.f32.mrf.mxu0
      %v598 = vadd.f32 0.0, %v597
      %v599 = vpop.f32.mrf.mxu0
      %v600 = vpop.f32.mrf.mxu0
      %v601 = vpop.f32.mrf.mxu0
      %602 = vdwg.mxu0
      %v603 = vpack.c.bf16 %v598, %v598
      %v605 = vunpack.c.l.b16 %v603
      %v606 = vpack.c.b16 %v605, %v605
      %607 = vrot.lane.b32.xlu0 %v606, 24
      %v608 = vpop.permute.xlu0 %607
      %vm610 = vcmask 257216
      %611 = vst.msk [vmem:[%s111] sm:$0xf] %vm610, %v608
      %p612 = scmp.lt.s32.totalorder %s12, 1
      %s613 = scalar_select %p612, %s12, 1
      %s614 = smul.addr %s613, 4
      %s615 = scalar_lea.vmem %s1, %s614
      // Predicated region
      $region25: #{gpt2_forward.12} parent=23 // pred_check
        %p616 = pneg %p56
      $region26: #{gpt2_forward.12} parent=23 // pred_check_branch
        %618 = sbr.rel (%p616) target = $region28
      $region27: #{gpt2_forward.12} parent=23 // pred_region
        _
      $region28: #{gpt2_forward.12} parent=23 // pred_fallthru
        _
    $region24: #{gpt2_forward.12} parent=5 // pred_fallthru
      _
    %p619 = scmp.le.s32.totalorder 2, %s7
    // Predicated region
    $region29: #{gpt2_forward.12} parent=5 // pred_check
      %p620 = pneg %p619
    $region30: #{gpt2_forward.12} parent=5 // pred_check_branch
      %622 = sbr.rel (%p620) target = $region32
    $region31: #{gpt2_forward.12} parent=5 // pred_region
      %s623 = ssub.s32 %s7, 2
      // Predicated region
      $region33: #{gpt2_forward.12} parent=31 // pred_check
        %p624 = pneg %p62
      $region34: #{gpt2_forward.12} parent=31 // pred_check_branch
        %626 = sbr.rel (%p624) target = $region36
      $region35: #{gpt2_forward.12} parent=31 // pred_region
        %p627 = scmp.lt.s32.totalorder %s13, 1
        %s628 = scalar_select %p627, %s13, 1
        %s629 = smul.addr %s628, 4
        %s630 = scalar_lea.vmem %s1, %s629
      $region36: #{gpt2_forward.12} parent=31 // pred_fallthru
        _
    $region32: #{gpt2_forward.12} parent=5 // pred_fallthru
      _
  $region6: #{gpt2_forward.12} parent=0 // loop_footer
    %s11 = sadd.s32 1, %s7
  $region7: #{gpt2_forward.12} parent=0 // loop_footer_branch
    %6 = sbr.rel target = $region3
  $region8: #{gpt2_forward.12} parent=0 // loop_exit
    _

// kernel: gpt2_forward.21
$region0: #{gpt2_forward.21}
  #allocation0 [shape = 'u32[]', space=smem, size = 0x4, offset = 0x4, fixed_abs, tag = 'smem constant byte address 0x4 - core index']
  #allocation1 [shape = 'u32[144,128]{1,0:T(1,128)}', space=vmem, size = 0x12000, scoped, tag = 'internal scratch']
  %s0 = inlined_call_operand.vmem [shape: bf16[16,32], index: 0, kind: input, shape index: {}]
  %s1 = inlined_call_operand.vmem [shape: f32[1,32], index: 1, kind: input, shape index: {}]
  %s2 = inlined_call_operand.vmem [shape: f32[1,32], index: 2, kind: input, shape index: {}]
  %s3 = inlined_call_operand.vmem [shape: bf16[64,32], index: 3, kind: input, shape index: {}]
  %s4 = inlined_call_operand.hbm [shape: f32[16,64], index: 4, kind: output, shape index: {}]
  %s5 = sld [smem:[#allocation0]]
  $region26: #{gpt2_forward.21} parent=0
    _
  %s7 = ssub.s32 1, %s5
  %s8 = scalar_select 0, %s7, %s5
  $region1: #{gpt2_forward.21} parent=0
    #allocation2 [shape = 'u8[8192]{0}', space=vmem, size = 0x2000, scoped, tag = 'output window, operand 0, single buffered']
    #allocation3 [shape = 's32[1]{0}', space=sflag, size = 0x4, scoped, tag = 'scoped memory for gpt2_forward.21']
    %9 = vsyncpa [#allocation3], 0
    // Predicated region
    $region2: #{gpt2_forward.21} parent=1 // pred_check
      _
    $region3: #{gpt2_forward.21} parent=1 // pred_check_branch
      %11 = sbr.rel (0) target = $region5
    $region4: #{gpt2_forward.21} parent=1 // pred_region
      _
    $region5: #{gpt2_forward.21} parent=1 // pred_fallthru
      _
    // Predicated region
    $region6: #{gpt2_forward.21} parent=1 // pred_check
      _
    $region7: #{gpt2_forward.21} parent=1 // pred_check_branch
      %13 = sbr.rel (0) target = $region9
    $region8: #{gpt2_forward.21} parent=1 // pred_region
      _
    $region9: #{gpt2_forward.21} parent=1 // pred_fallthru
      _
    // Predicated region
    $region10: #{gpt2_forward.21} parent=1 // pred_check
      _
    $region11: #{gpt2_forward.21} parent=1 // pred_check_branch
      %15 = sbr.rel (0) target = $region13
    $region12: #{gpt2_forward.21} parent=1 // pred_region
      _
    $region13: #{gpt2_forward.21} parent=1 // pred_fallthru
      _
    // Predicated region
    $region14: #{gpt2_forward.21} parent=1 // pred_check
      _
    $region15: #{gpt2_forward.21} parent=1 // pred_check_branch
      %17 = sbr.rel (0) target = $region17
    $region16: #{gpt2_forward.21} parent=1 // pred_region
      _
    $region17: #{gpt2_forward.21} parent=1 // pred_fallthru
      _
    %v19 = vld [vmem:[%s0] sm:$0xf]
    %v20 = vld [vmem:[%s0 + $0x4] sm:$0xf]
    %v21 = vunpack.c.l.bf16 %v19
    %v22 = vunpack.c.l.bf16 %v20
    %vm23 = vcmask 261120
    %v24 = vsel %vm23, %v21, 0.0
    %25 = vadd.xlane.f32.xlu0 %v24
    %v26 = vpop.xlane.xlu0 %25
    %v27 = vsel %vm23, %v22, 0.0
    %28 = vadd.xlane.f32.xlu0 %v27
    %v29 = vpop.xlane.xlu0 %28
    %v30 = vrcp.pop 32.0
    %v31 = vmul.f32 %v26, %v30
    %v32 = vmul.f32 %v29, %v30
    %v33 = vsub.f32 %v21, %v31
    %v34 = vsub.f32 %v22, %v32
    %v35 = vmul.f32 %v33, %v33
    %v36 = vmul.f32 %v34, %v34
    %v37 = vsel %vm23, %v35, 0.0
    %38 = vadd.xlane.f32.xlu0 %v37
    %v39 = vpop.xlane.xlu0 %38
    %v40 = vsel %vm23, %v36, 0.0
    %41 = vadd.xlane.f32.xlu0 %v40
    %v42 = vpop.xlane.xlu0 %41
    %v43 = vmul.f32 %v39, %v30
    %v44 = vmul.f32 %v42, %v30
    %v45 = vadd.f32 %v43, 1e-05
    %v46 = vadd.f32 %v44, 1e-05
    %v47 = vrsqrt.pop %v45
    %v48 = vrsqrt.pop %v46
    %v49 = vmul.f32 %v33, %v47
    %v50 = vmul.f32 %v34, %v48
    %v51 = vld [vmem:[%s1] sm:$0x1]
    %v53 = vlaneseq
    %v54 = vshrl.u32 %v53, 7
    %v55 = vsub.s32 0, %v54
    %v56 = vrot.slane %v51, %v55
    %v58 = vmul.f32 %v49, %v56
    %v59 = vmul.f32 %v50, %v56
    %v60 = vld [vmem:[%s2] sm:$0x1]
    %v62 = vlaneseq
    %v63 = vshrl.u32 %v62, 7
    %v64 = vsub.s32 0, %v63
    %v65 = vrot.slane %v60, %v64
    %v67 = vadd.f32 %v58, %v65
    %v68 = vadd.f32 %v59, %v65
    %v69 = vpack.c.bf16 %v68, %v67
    %v70 = vld [vmem:[%s3] sm:$0xf]
    %v71 = vld [vmem:[%s3 + $0x4] sm:$0xf]
    %v72 = vld [vmem:[%s3 + $0x8] sm:$0xf]
    %v73 = vld [vmem:[%s3 + $0xc] sm:$0xf]
    %v74 = vld [vmem:[%s3 + $0x10] sm:$0xf]
    %v75 = vld [vmem:[%s3 + $0x14] sm:$0xf]
    %v76 = vld [vmem:[%s3 + $0x18] sm:$0xf]
    %v77 = vld [vmem:[%s3 + $0x1c] sm:$0xf]
    %v86 = vunpack.c.l.b16 %v70
    %v87 = vunpack.c.l.b16 %v71
    %v88 = vunpack.c.l.b16 %v72
    %v89 = vunpack.c.l.b16 %v73
    %v90 = vunpack.c.l.b16 %v74
    %v91 = vunpack.c.l.b16 %v75
    %v92 = vunpack.c.l.b16 %v76
    %v93 = vunpack.c.l.b16 %v77
    %v94 = vpack.c.b16 %v87, %v86
    %v95 = vpack.c.b16 %v89, %v88
    %v96 = vpack.c.b16 %v91, %v90
    %v97 = vpack.c.b16 %v93, %v92
    %v99 = vsel %vm23, %v69, 0
    %v102 = vsel %vm23, %v94, 0
    %v105 = vsel %vm23, %v95, 0
    %v108 = vsel %vm23, %v96, 0
    %v111 = vsel %vm23, %v97, 0
    %113 = vmatprep.subr.bf16.mxu0 0
    %114 = vmatpush1.bf16.xpose.msra.mxu0 0
    %115 = vmatprep.subr.bf16.mxu0 0
    %116 = vmatpush1.bf16.xpose.msra.mxu0 0
    %117 = vmatprep.subr.bf16.mxu0 0
    %118 = vmatpush1.bf16.xpose.msra.mxu0 0
    %119 = vmatprep.subr.bf16.mxu0 0
    %120 = vmatpush1.bf16.xpose.msra.mxu0 0
    %121 = vmatprep.subr.bf16.mxu0 0
    %122 = vmatpush1.bf16.xpose.msra.mxu0 %v111
    %123 = vmatprep.subr.bf16.mxu0 0
    %124 = vmatpush1.bf16.xpose.msra.mxu0 %v108
    %125 = vmatprep.subr.bf16.mxu0 0
    %126 = vmatpush1.bf16.xpose.msra.mxu0 %v105
    %127 = vmatprep.subr.bf16.mxu0 0
    %128 = vmatpush1.bf16.xpose.msra.mxu0 %v102
    %129 = vmatprep.subr.bf16.mxu0 0
    %130 = vmatpush2.bf16.xpose.msra.mxu0 0
    %131 = vmatprep.subr.bf16.mxu0 0
    %132 = vmatpush2.bf16.xpose.msra.mxu0 0
    %133 = vmatprep.subr.bf16.mxu0 0
    %134 = vmatpush2.bf16.xpose.msra.mxu0 0
    %135 = vmatprep.subr.bf16.mxu0 0
    %136 = vmatpush2.bf16.xpose.msra.mxu0 0
    %137 = vmatprep.subr.bf16.mxu0 0
    %138 = vmatpush2.bf16.xpose.msra.mxu0 0
    %139 = vmatprep.subr.bf16.mxu0 0
    %140 = vmatpush2.bf16.xpose.msra.mxu0 0
    %141 = vmatprep.subr.bf16.mxu0 0
    %142 = vmatpush2.bf16.xpose.msra.mxu0 0
    %143 = vmatprep.subr.bf16.mxu0 0
    %144 = vmatpush2.bf16.xpose.msra.mxu0 0
    %145 = vmatprep.mubr.bf16.mxu0 0
    %146 = vmatmul.mubr.bf16.gmra.mxu0 %v99
    %v147 = vpop.f32.mrf.mxu0
    %v148 = vadd.f32 0.0, %v147
    %v149 = vpop.f32.mrf.mxu0
    %v150 = vpop.f32.mrf.mxu0
    %v151 = vadd.f32 0.0, %v150
    %v152 = vpop.f32.mrf.mxu0
    %153 = vdwg.mxu0
    %vm154 = vcmask 523264
    %155 = vst.msk [vmem:[#allocation2] sm:$0xff] %vm154, %v148
    %156 = vst.msk [vmem:[#allocation2 + $0x8] sm:$0xff] %vm154, %v151
    // Predicated region
    $region18: #{gpt2_forward.21} parent=1 // pred_check
      _
    $region19: #{gpt2_forward.21} parent=1 // pred_check_branch
      %158 = sbr.rel (0) target = $region21
    $region20: #{gpt2_forward.21} parent=1 // pred_region
      %s160 = ssub.s32 256, 256
      %161 = vsyncadd [#allocation3], %s160
      %s162 = sshll.u32 [#allocation2], 4
      %s163 = int_to_ptr.vmem [resolvable:$true] %s162
      %168 = dma.vmem_to_hbm [thread:$0]  %s163, 256, %s4, [#allocation3], 128, 128, 8
    $region21: #{gpt2_forward.21} parent=1 // pred_fallthru
      _
    // Predicated region
    $region22: #{gpt2_forward.21} parent=1 // pred_check
      _
    $region23: #{gpt2_forward.21} parent=1 // pred_check_branch
      %170 = sbr.rel (0) target = $region25
    $region24: #{gpt2_forward.21} parent=1 // pred_region
      %171 = dma.done [#allocation3], 256
    $region25: #{gpt2_forward.21} parent=1 // pred_fallthru
      _
    %172 = vsyncpa [#allocation3], 1

// kernel: gpt2_forward.15
$region0: #{gpt2_forward.15}
  #allocation0 [shape = 'u32[]', space=smem, size = 0x4, offset = 0x4, fixed_abs, tag = 'smem constant byte address 0x4 - core index']
  #allocation1 [shape = 'u32[144,128]{1,0:T(1,128)}', space=vmem, size = 0x12000, scoped, tag = 'internal scratch']
  #allocation2 [shape = 'f32[16,32]{1,0:T(8,128)}', space=vmem, size = 0x2000, scoped, tag = 'scratch operand']
  %s0 = inlined_call_operand.vmem [shape: bf16[16,128], index: 0, kind: input, shape index: {}]
  %s1 = inlined_call_operand.vmem [shape: bf16[128,32], index: 1, kind: input, shape index: {}]
  %s2 = inlined_call_operand.vmem [shape: f32[1,32], index: 2, kind: input, shape index: {}]
  %s3 = inlined_call_operand.vmem [shape: bf16[16,32], index: 3, kind: input, shape index: {}]
  %s4 = inlined_call_operand.vmem [shape: bf16[16,32], index: 4, kind: output, shape index: {}]
  %s5 = sld [smem:[#allocation0]]
  $region34: #{gpt2_forward.15} parent=0
    _
  %s7 = ssub.s32 1, %s5
  %s8 = scalar_select 0, %s7, %s5
  // Predicated region
  $region2: #{gpt2_forward.15} parent=0 // pred_check
    _
  $region3: #{gpt2_forward.15} parent=0 // pred_check_branch
    %10 = sbr.rel (0) target = $region5
  $region4: #{gpt2_forward.15} parent=0 // pred_region
    _
  $region5: #{gpt2_forward.15} parent=0 // pred_fallthru
    _
  // Predicated region
  $region6: #{gpt2_forward.15} parent=0 // pred_check
    _
  $region7: #{gpt2_forward.15} parent=0 // pred_check_branch
    %12 = sbr.rel (0) target = $region9
  $region8: #{gpt2_forward.15} parent=0 // pred_region
    _
  $region9: #{gpt2_forward.15} parent=0 // pred_fallthru
    _
  // Predicated region
  $region10: #{gpt2_forward.15} parent=0 // pred_check
    _
  $region11: #{gpt2_forward.15} parent=0 // pred_check_branch
    %14 = sbr.rel (0) target = $region13
  $region12: #{gpt2_forward.15} parent=0 // pred_region
    _
  $region13: #{gpt2_forward.15} parent=0 // pred_fallthru
    _
  // Predicated region
  $region14: #{gpt2_forward.15} parent=0 // pred_check
    _
  $region15: #{gpt2_forward.15} parent=0 // pred_check_branch
    %16 = sbr.rel (0) target = $region17
  $region16: #{gpt2_forward.15} parent=0 // pred_region
    _
  $region17: #{gpt2_forward.15} parent=0 // pred_fallthru
    _
  %p18 = scmp.eq.s32.totalorder 0, 0
  // Predicated region
  $region18: #{gpt2_forward.15} parent=0 // pred_check
    %p19 = pneg %p18
  $region19: #{gpt2_forward.15} parent=0 // pred_check_branch
    %21 = sbr.rel (%p19) target = $region21
  $region20: #{gpt2_forward.15} parent=0 // pred_region
    %vm22 = vcmask 261120
    %23 = vst.msk [vmem:[#allocation2] sm:$0xff] %vm22, 0.0
    %24 = vst.msk [vmem:[#allocation2 + $0x8] sm:$0xff] %vm22, 0.0
  $region21: #{gpt2_forward.15} parent=0 // pred_fallthru
    _
  %v25 = vld [vmem:[#allocation2] sm:$0xff]
  %v26 = vld [vmem:[#allocation2 + $0x8] sm:$0xff]
  %v27 = vld [vmem:[%s0] sm:$0xf]
  %v28 = vld [vmem:[%s0 + $0x4] sm:$0xf]
  %v29 = vld [vmem:[%s1] sm:$0xf]
  %v30 = vld [vmem:[%s1 + $0x4] sm:$0xf]
  %v31 = vld [vmem:[%s1 + $0x8] sm:$0xf]
  %v32 = vld [vmem:[%s1 + $0xc] sm:$0xf]
  %v33 = vld [vmem:[%s1 + $0x10] sm:$0xf]
  %v34 = vld [vmem:[%s1 + $0x14] sm:$0xf]
  %v35 = vld [vmem:[%s1 + $0x18] sm:$0xf]
  %v36 = vld [vmem:[%s1 + $0x1c] sm:$0xf]
  %v37 = vld [vmem:[%s1 + $0x20] sm:$0xf]
  %v38 = vld [vmem:[%s1 + $0x24] sm:$0xf]
  %v39 = vld [vmem:[%s1 + $0x28] sm:$0xf]
  %v40 = vld [vmem:[%s1 + $0x2c] sm:$0xf]
  %v41 = vld [vmem:[%s1 + $0x30] sm:$0xf]
  %v42 = vld [vmem:[%s1 + $0x34] sm:$0xf]
  %v43 = vld [vmem:[%s1 + $0x38] sm:$0xf]
  %v44 = vld [vmem:[%s1 + $0x3c] sm:$0xf]
  %v47 = vunpack.c.l.b16 %v27
  %v48 = vunpack.c.l.b16 %v28
  %v49 = vpack.c.b16 %v48, %v47
  %v67 = vunpack.c.l.b16 %v29
  %v68 = vunpack.c.l.b16 %v30
  %v69 = vunpack.c.l.b16 %v31
  %v70 = vunpack.c.l.b16 %v32
  %v71 = vunpack.c.l.b16 %v33
  %v72 = vunpack.c.l.b16 %v34
  %v73 = vunpack.c.l.b16 %v35
  %v74 = vunpack.c.l.b16 %v36
  %v75 = vunpack.c.l.b16 %v37
  %v76 = vunpack.c.l.b16 %v38
  %v77 = vunpack.c.l.b16 %v39
  %v78 = vunpack.c.l.b16 %v40
  %v79 = vunpack.c.l.b16 %v41
  %v80 = vunpack.c.l.b16 %v42
  %v81 = vunpack.c.l.b16 %v43
  %v82 = vunpack.c.l.b16 %v44
  %v83 = vpack.c.b16 %v68, %v67
  %v84 = vpack.c.b16 %v70, %v69
  %v85 = vpack.c.b16 %v72, %v71
  %v86 = vpack.c.b16 %v74, %v73
  %v87 = vpack.c.b16 %v76, %v75
  %v88 = vpack.c.b16 %v78, %v77
  %v89 = vpack.c.b16 %v80, %v79
  %v90 = vpack.c.b16 %v82, %v81
  %99 = vmatprep.subr.bf16.mxu0 0
  %100 = vmatpush1.bf16.msra.mxu0 %v90
  %101 = vmatprep.subr.bf16.mxu0 0
  %102 = vmatpush1.bf16.msra.mxu0 %v89
  %103 = vmatprep.subr.bf16.mxu0 0
  %104 = vmatpush1.bf16.msra.mxu0 %v88
  %105 = vmatprep.subr.bf16.mxu0 0
  %106 = vmatpush1.bf16.msra.mxu0 %v87
  %107 = vmatprep.subr.bf16.mxu0 0
  %108 = vmatpush1.bf16.msra.mxu0 %v86
  %109 = vmatprep.subr.bf16.mxu0 0
  %110 = vmatpush1.bf16.msra.mxu0 %v85
  %111 = vmatprep.subr.bf16.mxu0 0
  %112 = vmatpush1.bf16.msra.mxu0 %v84
  %113 = vmatprep.subr.bf16.mxu0 0
  %114 = vmatpush1.bf16.msra.mxu0 %v83
  %115 = vmatprep.subr.bf16.mxu0 0
  %116 = vmatpush2.bf16.msra.mxu0 0
  %117 = vmatprep.subr.bf16.mxu0 0
  %118 = vmatpush2.bf16.msra.mxu0 0
  %119 = vmatprep.subr.bf16.mxu0 0
  %120 = vmatpush2.bf16.msra.mxu0 0
  %121 = vmatprep.subr.bf16.mxu0 0
  %122 = vmatpush2.bf16.msra.mxu0 0
  %123 = vmatprep.subr.bf16.mxu0 0
  %124 = vmatpush2.bf16.msra.mxu0 0
  %125 = vmatprep.subr.bf16.mxu0 0
  %126 = vmatpush2.bf16.msra.mxu0 0
  %127 = vmatprep.subr.bf16.mxu0 0
  %128 = vmatpush2.bf16.msra.mxu0 0
  %129 = vmatprep.subr.bf16.mxu0 0
  %130 = vmatpush2.bf16.msra.mxu0 0
  %131 = vmatprep.mubr.bf16.mxu0 0
  %132 = vmatmul.mubr.bf16.gmra.mxu0 %v49
  %v133 = vpop.f32.mrf.mxu0
  %v134 = vadd.f32 0.0, %v133
  %v135 = vpop.f32.mrf.mxu0
  %v136 = vpop.f32.mrf.mxu0
  %v137 = vadd.f32 0.0, %v136
  %v138 = vpop.f32.mrf.mxu0
  %139 = vdwg.mxu0
  %v140 = vadd.f32 %v25, %v134
  %v141 = vadd.f32 %v26, %v137
  %vm142 = vcmask 261120
  %143 = vst.msk [vmem:[#allocation2] sm:$0xff] %vm142, %v140
  %144 = vst.msk [vmem:[#allocation2 + $0x8] sm:$0xff] %vm142, %v141
  // Predicated region
  $region22: #{gpt2_forward.15} parent=0 // pred_check
    %p145 = pneg %p18
  $region23: #{gpt2_forward.15} parent=0 // pred_check_branch
    %147 = sbr.rel (%p145) target = $region25
  $region24: #{gpt2_forward.15} parent=0 // pred_region
    %v148 = vld [vmem:[#allocation2] sm:$0xff]
    %v149 = vld [vmem:[#allocation2 + $0x8] sm:$0xff]
    %v150 = vld [vmem:[%s2] sm:$0x1]
    %v152 = vlaneseq
    %v153 = vshrl.u32 %v152, 7
    %v154 = vsub.s32 0, %v153
    %v155 = vrot.slane %v150, %v154
    %v157 = vadd.f32 %v148, %v155
    %v158 = vadd.f32 %v149, %v155
    %v159 = vld [vmem:[%s3] sm:$0xf]
    %v160 = vld [vmem:[%s3 + $0x4] sm:$0xf]
    %v161 = vunpack.c.l.bf16 %v159
    %v162 = vunpack.c.l.bf16 %v160
    %v163 = vadd.f32 %v157, %v161
    %v164 = vadd.f32 %v158, %v162
    %v165 = vpack.c.bf16 %v164, %v163
    %v167 = vunpack.c.l.b16 %v165
    %v168 = vunpack.c.h.b16 %v165
    %v169 = vpack.c.b16 %v167, %v167
    %v170 = vpack.c.b16 %v168, %v168
    %vm173 = vcmask 257024
    %174 = vst.msk [vmem:[%s4] sm:$0xf] %vm173, %v169
    %175 = vst.msk [vmem:[%s4 + $0x4] sm:$0xf] %vm173, %v170
  $region25: #{gpt2_forward.15} parent=0 // pred_fallthru
    _
  // Predicated region
  $region26: #{gpt2_forward.15} parent=0 // pred_check
    _
  $region27: #{gpt2_forward.15} parent=0 // pred_check_branch
    %177 = sbr.rel (0) target = $region29
  $region28: #{gpt2_forward.15} parent=0 // pred_region
    _
  $region29: #{gpt2_forward.15} parent=0 // pred_fallthru
    _
  // Predicated region
  $region30: #{gpt2_forward.15} parent=0 // pred_check
    _
  $region31: #{gpt2_forward.15} parent=0 // pred_check_branch
    %179 = sbr.rel (0) target = $region33
  $region32: #{gpt2_forward.15} parent=0 // pred_region
    _
  $region33: #{gpt2_forward.15} parent=0 // pred_fallthru
    _

</llo_original>
